<compile_context>
chip_gen: v7x
topology: tpu7x:2x2x1
jax: 0.10.0
libtpu: 0.0.40
codegen_flags: <defaults>
</compile_context>

<pallas_src>
import functools

import jax
import jax.numpy as jnp
from jax.experimental import pallas as pl
from jax.experimental.pallas import tpu as pltpu


# ----------------------------- Fused Pallas kernel -----------------------------

def _fused_forward_kernel(
    a_edge_hbm,      # (N, N)            bf16   GCN-normalized edge adjacency (ANY/HBM)
    a_cycle_hbm,     # (N, N)            bf16   GCN-normalized cycle adjacency (ANY/HBM)
    pool_ref,        # (Gp, N)           bf16   mean-pool matrix (rows padded to 8)
    x_ref,           # (N, in_dim)       bf16   node features
    emb_w_ref,       # (in_dim, H)       bf16
    conv_w_ref,      # (n_layer, H, H)   bf16   edge-conv weights
    conv2_w_ref,     # (H, H)            bf16   cycle-conv weight
    layer_p_ref,     # (n_layer+1, 3, H) f32    per layer: [conv_b; bn_gamma; bn_beta]
    vec_b_ref,       # (3, H)            f32    [emb_b; lin1_b; lin2_b]
    lin1_w_ref,      # ((n_layer+1)*H,H) bf16
    lin2_w_ref,      # (H, H)            bf16
    lin3_w_ref,      # (H, out_dim)      bf16
    lin3_b_ref,      # (1, out_dim)      f32
    o_ref,           # (Gp, out_dim)     f32
    a_edge_vmem,     # (N, N)            bf16   scratch
    a_cycle_vmem,    # (N, N)            bf16   scratch
    dma_sems,        # (2,)              DMA semaphores
    *, n_layer, hidden,
):
    del hidden
    f32 = jnp.float32
    bf16 = jnp.bfloat16

    # Kick off both adjacency DMAs immediately; compute overlaps the copies.
    edge_cp = pltpu.make_async_copy(a_edge_hbm, a_edge_vmem, dma_sems.at[0])
    cycle_cp = pltpu.make_async_copy(a_cycle_hbm, a_cycle_vmem, dma_sems.at[1])
    edge_cp.start()
    cycle_cp.start()

    def mm(a, b):
        # bf16 MXU inputs, f32 accumulate.
        return jnp.dot(a.astype(bf16), b.astype(bf16), preferred_element_type=f32)

    n_nodes = x_ref.shape[0]
    inv_n = 1.0 / float(n_nodes)

    def bn_relu_res(h, gamma, beta, res):
        # BatchNorm1d over nodes, training-mode batch stats (biased variance,
        # eps=1e-5), two-pass centered variance; then ReLU, then residual add.
        mean = jnp.sum(h, axis=0, keepdims=True) * inv_n
        d = h - mean
        var = jnp.sum(d * d, axis=0, keepdims=True) * inv_n
        xn = d * jax.lax.rsqrt(var + 1e-5)
        return jnp.maximum(gamma * xn + beta, 0.0) + res

    # x_0 = dropout(emb(x))  (dropout p=0 -> identity).  Runs while the
    # adjacency DMAs are in flight.
    x0 = mm(x_ref[...], emb_w_ref[...]) + vec_b_ref[0:1, :]

    # First-layer X@W for both branches, also overlapped with the DMAs.
    h0_edge = mm(x0, conv_w_ref[0])      # (N, H) f32
    h0_cycle = mm(x0, conv2_w_ref[...])  # (N, H) f32

    node_feats = []

    # ---- main GCN stack over edge_index / edge_attr ----
    edge_cp.wait()
    a_edge = a_edge_vmem[...]
    xcur = x0
    for i in range(n_layer):
        lp = layer_p_ref[i]              # (3, H): conv_b / bn_gamma / bn_beta
        xw = h0_edge if i == 0 else mm(xcur, conv_w_ref[i])
        conv = jnp.dot(a_edge, xw.astype(bf16),
                       preferred_element_type=f32) + lp[0:1, :]
        xcur = bn_relu_res(conv, lp[1:2, :], lp[2:3, :], xcur)
        node_feats.append(xcur)

    # ---- single GCN layer over cycle_index (no edge weights) ----
    cycle_cp.wait()
    a_cycle = a_cycle_vmem[...]
    lp = layer_p_ref[n_layer]
    conv = jnp.dot(a_cycle, h0_cycle.astype(bf16),
                   preferred_element_type=f32) + lp[0:1, :]
    xc = bn_relu_res(conv, lp[1:2, :], lp[2:3, :], x0)
    node_feats.append(xc)

    # Deferred pooling: one node-level lane-dense concat (N, (n_layer+1)*H)
    # followed by a single pool matmul whose output is already in lin1 layout.
    xcat = jnp.concatenate(node_feats, axis=1)
    pooled = jnp.dot(pool_ref[...], xcat.astype(bf16),
                     preferred_element_type=f32)          # (Gp, (n_layer+1)*H)

    # ---- MLP head: lin3(relu(lin2(relu(lin1(cat))))) ----
    h = jnp.maximum(mm(pooled, lin1_w_ref[...]) + vec_b_ref[1:2, :], 0.0)
    h = jnp.maximum(mm(h, lin2_w_ref[...]) + vec_b_ref[2:3, :], 0.0)
    o_ref[...] = mm(h, lin3_w_ref[...]) + lin3_b_ref[...]


# ----------------------------- JAX glue (setup) -----------------------------

def build_gcn_adj(edge_index, edge_weight, num_nodes):
    """Dense GCN-normalized adjacency: D^-1/2 (A + I) D^-1/2, A[dst, src]=w."""
    src = edge_index[0]
    dst = edge_index[1]
    a = jnp.zeros((num_nodes, num_nodes), jnp.float32).at[dst, src].add(edge_weight)
    a = a + jnp.eye(num_nodes, dtype=jnp.float32)  # self loops, weight 1
    deg = a.sum(axis=1)
    dis = jnp.where(deg > 0, 1.0 / jnp.sqrt(deg), 0.0)
    return dis[:, None] * a * dis[None, :]


def build_pool_matrix(batch, num_graphs):
    """P[g, n] = 1/|graph g| if node n belongs to graph g else 0."""
    onehot = (batch[None, :] == jnp.arange(num_graphs)[:, None]).astype(jnp.float32)
    counts = onehot.sum(axis=1, keepdims=True)
    return onehot / jnp.maximum(counts, 1.0)


def init_params(key, in_dim, hidden, out_dim, n_layer):
    keys = jax.random.split(key, 32)
    ki = iter(keys)

    def dense(k, fan_in, fan_out):
        return (jax.random.normal(k, (fan_in, fan_out), jnp.float32)
                * (1.0 / jnp.sqrt(fan_in)))

    p = {}
    p["emb_w"] = dense(next(ki), in_dim, hidden)
    p["emb_b"] = jnp.zeros((1, hidden), jnp.float32)

    p["conv_w"] = [dense(next(ki), hidden, hidden) for _ in range(n_layer)]
    p["conv_b"] = [jnp.zeros((1, hidden), jnp.float32) for _ in range(n_layer)]
    p["bn_g"] = [
        1.0 + 0.01 * jax.random.normal(next(ki), (1, hidden), jnp.float32)
        for _ in range(n_layer)
    ]
    p["bn_b"] = [
        0.01 * jax.random.normal(next(ki), (1, hidden), jnp.float32)
        for _ in range(n_layer)
    ]

    p["conv2_w"] = dense(next(ki), hidden, hidden)
    p["conv2_b"] = jnp.zeros((1, hidden), jnp.float32)
    p["bn2_g"] = 1.0 + 0.01 * jax.random.normal(next(ki), (1, hidden), jnp.float32)
    p["bn2_b"] = 0.01 * jax.random.normal(next(ki), (1, hidden), jnp.float32)

    p["lin1_w"] = dense(next(ki), hidden * (n_layer + 1), hidden)
    p["lin1_b"] = jnp.zeros((1, hidden), jnp.float32)
    p["lin2_w"] = dense(next(ki), hidden, hidden)
    p["lin2_b"] = jnp.zeros((1, hidden), jnp.float32)
    p["lin3_w"] = dense(next(ki), hidden, out_dim)
    p["lin3_b"] = jnp.zeros((1, out_dim), jnp.float32)
    return p


def _pick_vmem_limit():
    """Generation-aware scoped-VMEM limit (~3/4 of physical, capped at 100 MiB)."""
    cap = 128 * 1024 * 1024
    try:
        cap = int(pltpu.get_tpu_info().vmem_capacity_bytes)
    except Exception:
        pass
    return int(min(cap * 3 // 4, 100 * 1024 * 1024))


# ----------------------------- Forward pass -----------------------------

def cy2c_gcn_forward(params, x, a_edge, a_cycle, pool_mat, n_layer=3):
    hidden = params["emb_w"].shape[1]
    out_dim = params["lin3_w"].shape[1]
    bf16 = jnp.bfloat16
    f32 = jnp.float32

    # Pad the graph (row) dimension of the pool matrix to a sublane multiple
    # so the final stores are not tiny masked partial stores.
    n_graphs = pool_mat.shape[0]
    g_pad = max(8, ((n_graphs + 7) // 8) * 8)
    if g_pad != n_graphs:
        pool_mat = jnp.pad(pool_mat, ((0, g_pad - n_graphs), (0, 0)))

    # bf16 operands for the MXU; accumulation stays f32 inside the kernel.
    a_edge_b = a_edge.astype(bf16)
    a_cycle_b = a_cycle.astype(bf16)
    pool_b = pool_mat.astype(bf16)
    x_b = x.astype(bf16)
    emb_w = params["emb_w"].astype(bf16)

    conv_w_all = jnp.stack(params["conv_w"], axis=0).astype(bf16)   # (n_layer,H,H)
    conv2_w = params["conv2_w"].astype(bf16)

    lin1_w = params["lin1_w"].astype(bf16)
    lin2_w = params["lin2_w"].astype(bf16)
    lin3_w = params["lin3_w"].astype(bf16)

    # Pack per-layer (conv_b, bn_gamma, bn_beta) into one operand.
    layer_p = jnp.stack(
        [jnp.concatenate(
            [params["conv_b"][i], params["bn_g"][i], params["bn_b"][i]], axis=0)
         for i in range(n_layer)]
        + [jnp.concatenate(
            [params["conv2_b"], params["bn2_g"], params["bn2_b"]], axis=0)],
        axis=0,
    ).astype(f32)                                   # (n_layer+1, 3, hidden)

    vec_b = jnp.concatenate(
        [params["emb_b"], params["lin1_b"], params["lin2_b"]], axis=0
    ).astype(f32)                                   # (3, hidden)
    lin3_b = params["lin3_b"].astype(f32)           # (1, out_dim)

    kernel = functools.partial(
        _fused_forward_kernel, n_layer=n_layer, hidden=hidden)

    inputs = (a_edge_b, a_cycle_b, pool_b, x_b, emb_w, conv_w_all, conv2_w,
              layer_p, vec_b, lin1_w, lin2_w, lin3_w, lin3_b)

    n_nodes = a_edge.shape[0]
    vmem_spec = pl.BlockSpec(memory_space=pltpu.MemorySpace.VMEM)
    in_specs = [pl.BlockSpec(memory_space=pl.ANY),    # a_edge (manual DMA)
                pl.BlockSpec(memory_space=pl.ANY)]    # a_cycle (manual DMA)
    in_specs += [vmem_spec for _ in range(len(inputs) - 2)]

    out_padded = pl.pallas_call(
        kernel,
        out_shape=jax.ShapeDtypeStruct((g_pad, out_dim), f32),
        in_specs=in_specs,
        out_specs=vmem_spec,
        scratch_shapes=[
            pltpu.VMEM((n_nodes, n_nodes), bf16),   # a_edge landing buffer
            pltpu.VMEM((n_nodes, n_nodes), bf16),   # a_cycle landing buffer
            pltpu.SemaphoreType.DMA((2,)),
        ],
        compiler_params=pltpu.CompilerParams(
            vmem_limit_bytes=_pick_vmem_limit(),
        ),
    )(*inputs)

    return out_padded[:n_graphs]


# ----------------------------- Demo / test -----------------------------

if __name__ == "__main__":
    key = jax.random.PRNGKey(0)

    N = 16          # nodes total (2 graphs x 8 nodes)
    IN_DIM = 8
    HIDDEN = 32
    OUT_DIM = 4
    N_LAYER = 3
    N_GRAPHS = 2

    k_x, k_w, k_e = jax.random.split(key, 3)

    # node features
    x = jax.random.normal(k_x, (N, IN_DIM), jnp.float32)

    # batch assignment: nodes 0-7 -> graph 0, nodes 8-15 -> graph 1
    batch = jnp.concatenate(
        [jnp.zeros((8,), jnp.int32), jnp.ones((8,), jnp.int32)]
    )

    # edge_index: ring inside each graph, bidirectional
    src, dst = [], []
    for base in (0, 8):
        for j in range(8):
            s, t = base + j, base + (j + 1) % 8
            src += [s, t]
            dst += [t, s]
    edge_index = jnp.array([src, dst], jnp.int32)
    edge_attr = 0.5 + jnp.abs(
        jax.random.normal(k_e, (edge_index.shape[1],), jnp.float32)
    )

    # cycle_index: small cycle over the first 4 nodes of each graph, bidirectional
    csrc, cdst = [], []
    for base in (0, 8):
        for j in range(4):
            s, t = base + j, base + (j + 1) % 4
            csrc += [s, t]
            cdst += [t, s]
    cycle_index = jnp.array([csrc, cdst], jnp.int32)

    # densify graph structure (glue)
    a_edge = build_gcn_adj(edge_index, edge_attr, N)
    a_cycle = build_gcn_adj(
        cycle_index, jnp.ones((cycle_index.shape[1],), jnp.float32), N
    )
    pool_mat = build_pool_matrix(batch, N_GRAPHS)

    params = init_params(k_w, IN_DIM, HIDDEN, OUT_DIM, N_LAYER)

    out = cy2c_gcn_forward(params, x, a_edge, a_cycle, pool_mat, n_layer=N_LAYER)
    out = jax.block_until_ready(out)

    assert out.shape == (N_GRAPHS, OUT_DIM)
    assert bool(jnp.all(jnp.isfinite(out)))
    print("KERNEL_OK")
</pallas_src>

<mosaic_0001>
module attributes {stable_mosaic.version = 11 : i64} {
  func.func @_fused_forward_kernel(%arg0: memref<16x16xbf16, #tpu.memory_space<any>>, %arg1: memref<16x16xbf16, #tpu.memory_space<any>>, %arg2: memref<8x16xbf16, #tpu.memory_space<vmem>>, %arg3: memref<16x8xbf16, #tpu.memory_space<vmem>>, %arg4: memref<8x32xbf16, #tpu.memory_space<vmem>>, %arg5: memref<3x32x32xbf16, #tpu.memory_space<vmem>>, %arg6: memref<32x32xbf16, #tpu.memory_space<vmem>>, %arg7: memref<4x3x32xf32, #tpu.memory_space<vmem>>, %arg8: memref<3x32xf32, #tpu.memory_space<vmem>>, %arg9: memref<128x32xbf16, #tpu.memory_space<vmem>>, %arg10: memref<32x32xbf16, #tpu.memory_space<vmem>>, %arg11: memref<32x4xbf16, #tpu.memory_space<vmem>>, %arg12: memref<1x4xf32, #tpu.memory_space<vmem>>, %arg13: memref<8x4xf32, #tpu.memory_space<vmem>>, %arg14: memref<16x16xbf16, #tpu.memory_space<vmem>>, %arg15: memref<16x16xbf16, #tpu.memory_space<vmem>>, %arg16: memref<2x!tpu.dma_semaphore, #tpu.memory_space<semaphore_mem>>) attributes {dimension_semantics = [], scalar_prefetch = 0 : i64, scratch_operands = 3 : i64, tpu.core_type = #tpu.core_type<tc>} {
    %c0_i32 = arith.constant 0 : i32
    %0 = tpu.memref_slice %arg16[%c0_i32] : memref<2x!tpu.dma_semaphore, #tpu.memory_space<semaphore_mem>> -> memref<1x!tpu.dma_semaphore, #tpu.memory_space<semaphore_mem>>
    %1 = tpu.memref_squeeze %0 : memref<1x!tpu.dma_semaphore, #tpu.memory_space<semaphore_mem>> -> memref<!tpu.dma_semaphore, #tpu.memory_space<semaphore_mem>>
    tpu.enqueue_dma source(%arg0 : memref<16x16xbf16, #tpu.memory_space<any>>) target(%arg14 : memref<16x16xbf16, #tpu.memory_space<vmem>>) target_semaphore(%1 : memref<!tpu.dma_semaphore, #tpu.memory_space<semaphore_mem>>)
    %c1_i32 = arith.constant 1 : i32
    %2 = tpu.memref_slice %arg16[%c1_i32] : memref<2x!tpu.dma_semaphore, #tpu.memory_space<semaphore_mem>> -> memref<1x!tpu.dma_semaphore, #tpu.memory_space<semaphore_mem>>
    %3 = tpu.memref_squeeze %2 : memref<1x!tpu.dma_semaphore, #tpu.memory_space<semaphore_mem>> -> memref<!tpu.dma_semaphore, #tpu.memory_space<semaphore_mem>>
    tpu.enqueue_dma source(%arg1 : memref<16x16xbf16, #tpu.memory_space<any>>) target(%arg15 : memref<16x16xbf16, #tpu.memory_space<vmem>>) target_semaphore(%3 : memref<!tpu.dma_semaphore, #tpu.memory_space<semaphore_mem>>)
    %c0 = arith.constant 0 : index
    %c0_0 = arith.constant 0 : index
    %4 = vector.load %arg3[%c0, %c0_0] : memref<16x8xbf16, #tpu.memory_space<vmem>>, vector<16x8xbf16>
    %c0_1 = arith.constant 0 : index
    %c0_2 = arith.constant 0 : index
    %5 = vector.load %arg4[%c0_1, %c0_2] : memref<8x32xbf16, #tpu.memory_space<vmem>>, vector<8x32xbf16>
    %cst = arith.constant dense<0.000000e+00> : vector<16x32xf32>
    %6 = tpu.matmul %4, %5, %cst {dimension_numbers = #tpu.dot_dimension_numbers<[1], [0], [0], [1], [0, 0, 1, 1], [], []>} : vector<16x8xbf16>, vector<8x32xbf16>, vector<16x32xf32> -> vector<16x32xf32>
    %c0_3 = arith.constant 0 : index
    %c0_4 = arith.constant 0 : index
    %7 = vector.load %arg8[%c0_3, %c0_4] : memref<3x32xf32, #tpu.memory_space<vmem>>, vector<1x32xf32>
    %8 = vector.broadcast %7 : vector<1x32xf32> to vector<16x32xf32>
    %9 = arith.addf %6, %8 : vector<16x32xf32>
    %c0_5 = arith.constant 0 : index
    %c0_6 = arith.constant 0 : index
    %c0_7 = arith.constant 0 : index
    %10 = vector.load %arg5[%c0_5, %c0_6, %c0_7] : memref<3x32x32xbf16, #tpu.memory_space<vmem>>, vector<1x32x32xbf16>
    %11 = vector.shape_cast %10 : vector<1x32x32xbf16> to vector<32x32xbf16>
    %12 = arith.truncf %9 : vector<16x32xf32> to vector<16x32xbf16>
    %cst_8 = arith.constant dense<0.000000e+00> : vector<16x32xf32>
    %13 = tpu.matmul %12, %11, %cst_8 {dimension_numbers = #tpu.dot_dimension_numbers<[1], [0], [0], [1], [0, 0, 1, 1], [], []>} : vector<16x32xbf16>, vector<32x32xbf16>, vector<16x32xf32> -> vector<16x32xf32>
    %c0_9 = arith.constant 0 : index
    %c0_10 = arith.constant 0 : index
    %14 = vector.load %arg6[%c0_9, %c0_10] : memref<32x32xbf16, #tpu.memory_space<vmem>>, vector<32x32xbf16>
    %15 = arith.truncf %9 : vector<16x32xf32> to vector<16x32xbf16>
    %cst_11 = arith.constant dense<0.000000e+00> : vector<16x32xf32>
    %16 = tpu.matmul %15, %14, %cst_11 {dimension_numbers = #tpu.dot_dimension_numbers<[1], [0], [0], [1], [0, 0, 1, 1], [], []>} : vector<16x32xbf16>, vector<32x32xbf16>, vector<16x32xf32> -> vector<16x32xf32>
    %c0_i32_12 = arith.constant 0 : i32
    %17 = tpu.memref_slice %arg16[%c0_i32_12] : memref<2x!tpu.dma_semaphore, #tpu.memory_space<semaphore_mem>> -> memref<1x!tpu.dma_semaphore, #tpu.memory_space<semaphore_mem>>
    %18 = tpu.memref_squeeze %17 : memref<1x!tpu.dma_semaphore, #tpu.memory_space<semaphore_mem>> -> memref<!tpu.dma_semaphore, #tpu.memory_space<semaphore_mem>>
    tpu.wait_dma2 semaphore(%18 : memref<!tpu.dma_semaphore, #tpu.memory_space<semaphore_mem>>) src(%arg0 : memref<16x16xbf16, #tpu.memory_space<any>>) dst(%arg14 : memref<16x16xbf16, #tpu.memory_space<vmem>>)
    %c0_13 = arith.constant 0 : index
    %c0_14 = arith.constant 0 : index
    %19 = vector.load %arg14[%c0_13, %c0_14] : memref<16x16xbf16, #tpu.memory_space<vmem>>, vector<16x16xbf16>
    %c0_15 = arith.constant 0 : index
    %c0_16 = arith.constant 0 : index
    %c0_17 = arith.constant 0 : index
    %20 = vector.load %arg7[%c0_15, %c0_16, %c0_17] : memref<4x3x32xf32, #tpu.memory_space<vmem>>, vector<1x3x32xf32>
    %21 = vector.shape_cast %20 : vector<1x3x32xf32> to vector<3x32xf32>
    %22 = arith.truncf %13 : vector<16x32xf32> to vector<16x32xbf16>
    %cst_18 = arith.constant dense<0.000000e+00> : vector<16x32xf32>
    %23 = tpu.matmul %19, %22, %cst_18 {dimension_numbers = #tpu.dot_dimension_numbers<[1], [0], [0], [1], [0, 0, 1, 1], [], []>} : vector<16x16xbf16>, vector<16x32xbf16>, vector<16x32xf32> -> vector<16x32xf32>
    %24 = vector.extract_strided_slice %21 {offsets = [0, 0], sizes = [1, 32], strides = [1, 1]} : vector<3x32xf32> to vector<1x32xf32>
    %25 = vector.broadcast %24 : vector<1x32xf32> to vector<16x32xf32>
    %26 = arith.addf %23, %25 : vector<16x32xf32>
    %27 = vector.extract_strided_slice %21 {offsets = [1, 0], sizes = [1, 32], strides = [1, 1]} : vector<3x32xf32> to vector<1x32xf32>
    %28 = vector.extract_strided_slice %21 {offsets = [2, 0], sizes = [1, 32], strides = [1, 1]} : vector<3x32xf32> to vector<1x32xf32>
    %cst_19 = arith.constant dense<0.000000e+00> : vector<32xf32>
    %29 = vector.multi_reduction <add>, %26, %cst_19 [0] : vector<16x32xf32> to vector<32xf32>
    %30 = vector.shape_cast %29 : vector<32xf32> to vector<1x32xf32>
    %cst_20 = arith.constant 6.250000e-02 : f32
    %31 = vector.broadcast %cst_20 : f32 to vector<1x32xf32>
    %32 = arith.mulf %30, %31 : vector<1x32xf32>
    %33 = vector.broadcast %32 : vector<1x32xf32> to vector<16x32xf32>
    %34 = arith.subf %26, %33 : vector<16x32xf32>
    %35 = arith.mulf %34, %34 : vector<16x32xf32>
    %cst_21 = arith.constant dense<0.000000e+00> : vector<32xf32>
    %36 = vector.multi_reduction <add>, %35, %cst_21 [0] : vector<16x32xf32> to vector<32xf32>
    %37 = vector.shape_cast %36 : vector<32xf32> to vector<1x32xf32>
    %cst_22 = arith.constant 6.250000e-02 : f32
    %38 = vector.broadcast %cst_22 : f32 to vector<1x32xf32>
    %39 = arith.mulf %37, %38 : vector<1x32xf32>
    %cst_23 = arith.constant 9.99999974E-6 : f32
    %40 = vector.broadcast %cst_23 : f32 to vector<1x32xf32>
    %41 = arith.addf %39, %40 : vector<1x32xf32>
    %42 = math.rsqrt %41 : vector<1x32xf32>
    %43 = vector.broadcast %42 : vector<1x32xf32> to vector<16x32xf32>
    %44 = arith.mulf %34, %43 : vector<16x32xf32>
    %45 = vector.broadcast %27 : vector<1x32xf32> to vector<16x32xf32>
    %46 = arith.mulf %45, %44 : vector<16x32xf32>
    %47 = vector.broadcast %28 : vector<1x32xf32> to vector<16x32xf32>
    %48 = arith.addf %46, %47 : vector<16x32xf32>
    %cst_24 = arith.constant 0.000000e+00 : f32
    %49 = vector.broadcast %cst_24 : f32 to vector<16x32xf32>
    %50 = arith.maximumf %48, %49 : vector<16x32xf32>
    %51 = arith.addf %50, %9 : vector<16x32xf32>
    %c1 = arith.constant 1 : index
    %c0_25 = arith.constant 0 : index
    %c0_26 = arith.constant 0 : index
    %52 = vector.load %arg7[%c1, %c0_25, %c0_26] : memref<4x3x32xf32, #tpu.memory_space<vmem>>, vector<1x3x32xf32>
    %53 = vector.shape_cast %52 : vector<1x3x32xf32> to vector<3x32xf32>
    %c1_27 = arith.constant 1 : index
    %c0_28 = arith.constant 0 : index
    %c0_29 = arith.constant 0 : index
    %54 = vector.load %arg5[%c1_27, %c0_28, %c0_29] : memref<3x32x32xbf16, #tpu.memory_space<vmem>>, vector<1x32x32xbf16>
    %55 = vector.shape_cast %54 : vector<1x32x32xbf16> to vector<32x32xbf16>
    %56 = arith.truncf %51 : vector<16x32xf32> to vector<16x32xbf16>
    %cst_30 = arith.constant dense<0.000000e+00> : vector<16x32xf32>
    %57 = tpu.matmul %56, %55, %cst_30 {dimension_numbers = #tpu.dot_dimension_numbers<[1], [0], [0], [1], [0, 0, 1, 1], [], []>} : vector<16x32xbf16>, vector<32x32xbf16>, vector<16x32xf32> -> vector<16x32xf32>
    %58 = arith.truncf %57 : vector<16x32xf32> to vector<16x32xbf16>
    %cst_31 = arith.constant dense<0.000000e+00> : vector<16x32xf32>
    %59 = tpu.matmul %19, %58, %cst_31 {dimension_numbers = #tpu.dot_dimension_numbers<[1], [0], [0], [1], [0, 0, 1, 1], [], []>} : vector<16x16xbf16>, vector<16x32xbf16>, vector<16x32xf32> -> vector<16x32xf32>
    %60 = vector.extract_strided_slice %53 {offsets = [0, 0], sizes = [1, 32], strides = [1, 1]} : vector<3x32xf32> to vector<1x32xf32>
    %61 = vector.broadcast %60 : vector<1x32xf32> to vector<16x32xf32>
    %62 = arith.addf %59, %61 : vector<16x32xf32>
    %63 = vector.extract_strided_slice %53 {offsets = [1, 0], sizes = [1, 32], strides = [1, 1]} : vector<3x32xf32> to vector<1x32xf32>
    %64 = vector.extract_strided_slice %53 {offsets = [2, 0], sizes = [1, 32], strides = [1, 1]} : vector<3x32xf32> to vector<1x32xf32>
    %cst_32 = arith.constant dense<0.000000e+00> : vector<32xf32>
    %65 = vector.multi_reduction <add>, %62, %cst_32 [0] : vector<16x32xf32> to vector<32xf32>
    %66 = vector.shape_cast %65 : vector<32xf32> to vector<1x32xf32>
    %cst_33 = arith.constant 6.250000e-02 : f32
    %67 = vector.broadcast %cst_33 : f32 to vector<1x32xf32>
    %68 = arith.mulf %66, %67 : vector<1x32xf32>
    %69 = vector.broadcast %68 : vector<1x32xf32> to vector<16x32xf32>
    %70 = arith.subf %62, %69 : vector<16x32xf32>
    %71 = arith.mulf %70, %70 : vector<16x32xf32>
    %cst_34 = arith.constant dense<0.000000e+00> : vector<32xf32>
    %72 = vector.multi_reduction <add>, %71, %cst_34 [0] : vector<16x32xf32> to vector<32xf32>
    %73 = vector.shape_cast %72 : vector<32xf32> to vector<1x32xf32>
    %cst_35 = arith.constant 6.250000e-02 : f32
    %74 = vector.broadcast %cst_35 : f32 to vector<1x32xf32>
    %75 = arith.mulf %73, %74 : vector<1x32xf32>
    %cst_36 = arith.constant 9.99999974E-6 : f32
    %76 = vector.broadcast %cst_36 : f32 to vector<1x32xf32>
    %77 = arith.addf %75, %76 : vector<1x32xf32>
    %78 = math.rsqrt %77 : vector<1x32xf32>
    %79 = vector.broadcast %78 : vector<1x32xf32> to vector<16x32xf32>
    %80 = arith.mulf %70, %79 : vector<16x32xf32>
    %81 = vector.broadcast %63 : vector<1x32xf32> to vector<16x32xf32>
    %82 = arith.mulf %81, %80 : vector<16x32xf32>
    %83 = vector.broadcast %64 : vector<1x32xf32> to vector<16x32xf32>
    %84 = arith.addf %82, %83 : vector<16x32xf32>
    %cst_37 = arith.constant 0.000000e+00 : f32
    %85 = vector.broadcast %cst_37 : f32 to vector<16x32xf32>
    %86 = arith.maximumf %84, %85 : vector<16x32xf32>
    %87 = arith.addf %86, %51 : vector<16x32xf32>
    %c2 = arith.constant 2 : index
    %c0_38 = arith.constant 0 : index
    %c0_39 = arith.constant 0 : index
    %88 = vector.load %arg7[%c2, %c0_38, %c0_39] : memref<4x3x32xf32, #tpu.memory_space<vmem>>, vector<1x3x32xf32>
    %89 = vector.shape_cast %88 : vector<1x3x32xf32> to vector<3x32xf32>
    %c2_40 = arith.constant 2 : index
    %c0_41 = arith.constant 0 : index
    %c0_42 = arith.constant 0 : index
    %90 = vector.load %arg5[%c2_40, %c0_41, %c0_42] : memref<3x32x32xbf16, #tpu.memory_space<vmem>>, vector<1x32x32xbf16>
    %91 = vector.shape_cast %90 : vector<1x32x32xbf16> to vector<32x32xbf16>
    %92 = arith.truncf %87 : vector<16x32xf32> to vector<16x32xbf16>
    %cst_43 = arith.constant dense<0.000000e+00> : vector<16x32xf32>
    %93 = tpu.matmul %92, %91, %cst_43 {dimension_numbers = #tpu.dot_dimension_numbers<[1], [0], [0], [1], [0, 0, 1, 1], [], []>} : vector<16x32xbf16>, vector<32x32xbf16>, vector<16x32xf32> -> vector<16x32xf32>
    %94 = arith.truncf %93 : vector<16x32xf32> to vector<16x32xbf16>
    %cst_44 = arith.constant dense<0.000000e+00> : vector<16x32xf32>
    %95 = tpu.matmul %19, %94, %cst_44 {dimension_numbers = #tpu.dot_dimension_numbers<[1], [0], [0], [1], [0, 0, 1, 1], [], []>} : vector<16x16xbf16>, vector<16x32xbf16>, vector<16x32xf32> -> vector<16x32xf32>
    %96 = vector.extract_strided_slice %89 {offsets = [0, 0], sizes = [1, 32], strides = [1, 1]} : vector<3x32xf32> to vector<1x32xf32>
    %97 = vector.broadcast %96 : vector<1x32xf32> to vector<16x32xf32>
    %98 = arith.addf %95, %97 : vector<16x32xf32>
    %99 = vector.extract_strided_slice %89 {offsets = [1, 0], sizes = [1, 32], strides = [1, 1]} : vector<3x32xf32> to vector<1x32xf32>
    %100 = vector.extract_strided_slice %89 {offsets = [2, 0], sizes = [1, 32], strides = [1, 1]} : vector<3x32xf32> to vector<1x32xf32>
    %cst_45 = arith.constant dense<0.000000e+00> : vector<32xf32>
    %101 = vector.multi_reduction <add>, %98, %cst_45 [0] : vector<16x32xf32> to vector<32xf32>
    %102 = vector.shape_cast %101 : vector<32xf32> to vector<1x32xf32>
    %cst_46 = arith.constant 6.250000e-02 : f32
    %103 = vector.broadcast %cst_46 : f32 to vector<1x32xf32>
    %104 = arith.mulf %102, %103 : vector<1x32xf32>
    %105 = vector.broadcast %104 : vector<1x32xf32> to vector<16x32xf32>
    %106 = arith.subf %98, %105 : vector<16x32xf32>
    %107 = arith.mulf %106, %106 : vector<16x32xf32>
    %cst_47 = arith.constant dense<0.000000e+00> : vector<32xf32>
    %108 = vector.multi_reduction <add>, %107, %cst_47 [0] : vector<16x32xf32> to vector<32xf32>
    %109 = vector.shape_cast %108 : vector<32xf32> to vector<1x32xf32>
    %cst_48 = arith.constant 6.250000e-02 : f32
    %110 = vector.broadcast %cst_48 : f32 to vector<1x32xf32>
    %111 = arith.mulf %109, %110 : vector<1x32xf32>
    %cst_49 = arith.constant 9.99999974E-6 : f32
    %112 = vector.broadcast %cst_49 : f32 to vector<1x32xf32>
    %113 = arith.addf %111, %112 : vector<1x32xf32>
    %114 = math.rsqrt %113 : vector<1x32xf32>
    %115 = vector.broadcast %114 : vector<1x32xf32> to vector<16x32xf32>
    %116 = arith.mulf %106, %115 : vector<16x32xf32>
    %117 = vector.broadcast %99 : vector<1x32xf32> to vector<16x32xf32>
    %118 = arith.mulf %117, %116 : vector<16x32xf32>
    %119 = vector.broadcast %100 : vector<1x32xf32> to vector<16x32xf32>
    %120 = arith.addf %118, %119 : vector<16x32xf32>
    %cst_50 = arith.constant 0.000000e+00 : f32
    %121 = vector.broadcast %cst_50 : f32 to vector<16x32xf32>
    %122 = arith.maximumf %120, %121 : vector<16x32xf32>
    %123 = arith.addf %122, %87 : vector<16x32xf32>
    %c1_i32_51 = arith.constant 1 : i32
    %124 = tpu.memref_slice %arg16[%c1_i32_51] : memref<2x!tpu.dma_semaphore, #tpu.memory_space<semaphore_mem>> -> memref<1x!tpu.dma_semaphore, #tpu.memory_space<semaphore_mem>>
    %125 = tpu.memref_squeeze %124 : memref<1x!tpu.dma_semaphore, #tpu.memory_space<semaphore_mem>> -> memref<!tpu.dma_semaphore, #tpu.memory_space<semaphore_mem>>
    tpu.wait_dma2 semaphore(%125 : memref<!tpu.dma_semaphore, #tpu.memory_space<semaphore_mem>>) src(%arg1 : memref<16x16xbf16, #tpu.memory_space<any>>) dst(%arg15 : memref<16x16xbf16, #tpu.memory_space<vmem>>)
    %c0_52 = arith.constant 0 : index
    %c0_53 = arith.constant 0 : index
    %126 = vector.load %arg15[%c0_52, %c0_53] : memref<16x16xbf16, #tpu.memory_space<vmem>>, vector<16x16xbf16>
    %c3 = arith.constant 3 : index
    %c0_54 = arith.constant 0 : index
    %c0_55 = arith.constant 0 : index
    %127 = vector.load %arg7[%c3, %c0_54, %c0_55] : memref<4x3x32xf32, #tpu.memory_space<vmem>>, vector<1x3x32xf32>
    %128 = vector.shape_cast %127 : vector<1x3x32xf32> to vector<3x32xf32>
    %129 = arith.truncf %16 : vector<16x32xf32> to vector<16x32xbf16>
    %cst_56 = arith.constant dense<0.000000e+00> : vector<16x32xf32>
    %130 = tpu.matmul %126, %129, %cst_56 {dimension_numbers = #tpu.dot_dimension_numbers<[1], [0], [0], [1], [0, 0, 1, 1], [], []>} : vector<16x16xbf16>, vector<16x32xbf16>, vector<16x32xf32> -> vector<16x32xf32>
    %131 = vector.extract_strided_slice %128 {offsets = [0, 0], sizes = [1, 32], strides = [1, 1]} : vector<3x32xf32> to vector<1x32xf32>
    %132 = vector.broadcast %131 : vector<1x32xf32> to vector<16x32xf32>
    %133 = arith.addf %130, %132 : vector<16x32xf32>
    %134 = vector.extract_strided_slice %128 {offsets = [1, 0], sizes = [1, 32], strides = [1, 1]} : vector<3x32xf32> to vector<1x32xf32>
    %135 = vector.extract_strided_slice %128 {offsets = [2, 0], sizes = [1, 32], strides = [1, 1]} : vector<3x32xf32> to vector<1x32xf32>
    %cst_57 = arith.constant dense<0.000000e+00> : vector<32xf32>
    %136 = vector.multi_reduction <add>, %133, %cst_57 [0] : vector<16x32xf32> to vector<32xf32>
    %137 = vector.shape_cast %136 : vector<32xf32> to vector<1x32xf32>
    %cst_58 = arith.constant 6.250000e-02 : f32
    %138 = vector.broadcast %cst_58 : f32 to vector<1x32xf32>
    %139 = arith.mulf %137, %138 : vector<1x32xf32>
    %140 = vector.broadcast %139 : vector<1x32xf32> to vector<16x32xf32>
    %141 = arith.subf %133, %140 : vector<16x32xf32>
    %142 = arith.mulf %141, %141 : vector<16x32xf32>
    %cst_59 = arith.constant dense<0.000000e+00> : vector<32xf32>
    %143 = vector.multi_reduction <add>, %142, %cst_59 [0] : vector<16x32xf32> to vector<32xf32>
    %144 = vector.shape_cast %143 : vector<32xf32> to vector<1x32xf32>
    %cst_60 = arith.constant 6.250000e-02 : f32
    %145 = vector.broadcast %cst_60 : f32 to vector<1x32xf32>
    %146 = arith.mulf %144, %145 : vector<1x32xf32>
    %cst_61 = arith.constant 9.99999974E-6 : f32
    %147 = vector.broadcast %cst_61 : f32 to vector<1x32xf32>
    %148 = arith.addf %146, %147 : vector<1x32xf32>
    %149 = math.rsqrt %148 : vector<1x32xf32>
    %150 = vector.broadcast %149 : vector<1x32xf32> to vector<16x32xf32>
    %151 = arith.mulf %141, %150 : vector<16x32xf32>
    %152 = vector.broadcast %134 : vector<1x32xf32> to vector<16x32xf32>
    %153 = arith.mulf %152, %151 : vector<16x32xf32>
    %154 = vector.broadcast %135 : vector<1x32xf32> to vector<16x32xf32>
    %155 = arith.addf %153, %154 : vector<16x32xf32>
    %cst_62 = arith.constant 0.000000e+00 : f32
    %156 = vector.broadcast %cst_62 : f32 to vector<16x32xf32>
    %157 = arith.maximumf %155, %156 : vector<16x32xf32>
    %158 = arith.addf %157, %9 : vector<16x32xf32>
    %159 = tpu.concatenate %51, %87, %123, %158 in 1 : vector<16x32xf32>, vector<16x32xf32>, vector<16x32xf32>, vector<16x32xf32> -> vector<16x128xf32>
    %c0_63 = arith.constant 0 : index
    %c0_64 = arith.constant 0 : index
    %160 = vector.load %arg2[%c0_63, %c0_64] : memref<8x16xbf16, #tpu.memory_space<vmem>>, vector<8x16xbf16>
    %161 = arith.truncf %159 : vector<16x128xf32> to vector<16x128xbf16>
    %cst_65 = arith.constant dense<0.000000e+00> : vector<8x128xf32>
    %162 = tpu.matmul %160, %161, %cst_65 {dimension_numbers = #tpu.dot_dimension_numbers<[1], [0], [0], [1], [0, 0, 1, 1], [], []>} : vector<8x16xbf16>, vector<16x128xbf16>, vector<8x128xf32> -> vector<8x128xf32>
    %c0_66 = arith.constant 0 : index
    %c0_67 = arith.constant 0 : index
    %163 = vector.load %arg9[%c0_66, %c0_67] : memref<128x32xbf16, #tpu.memory_space<vmem>>, vector<128x32xbf16>
    %164 = arith.truncf %162 : vector<8x128xf32> to vector<8x128xbf16>
    %cst_68 = arith.constant dense<0.000000e+00> : vector<8x32xf32>
    %165 = tpu.matmul %164, %163, %cst_68 {dimension_numbers = #tpu.dot_dimension_numbers<[1], [0], [0], [1], [0, 0, 1, 1], [], []>} : vector<8x128xbf16>, vector<128x32xbf16>, vector<8x32xf32> -> vector<8x32xf32>
    %c1_69 = arith.constant 1 : index
    %c0_70 = arith.constant 0 : index
    %166 = vector.load %arg8[%c1_69, %c0_70] : memref<3x32xf32, #tpu.memory_space<vmem>>, vector<1x32xf32>
    %167 = vector.broadcast %166 : vector<1x32xf32> to vector<8x32xf32>
    %168 = arith.addf %165, %167 : vector<8x32xf32>
    %cst_71 = arith.constant 0.000000e+00 : f32
    %169 = vector.broadcast %cst_71 : f32 to vector<8x32xf32>
    %170 = arith.maximumf %168, %169 : vector<8x32xf32>
    %c0_72 = arith.constant 0 : index
    %c0_73 = arith.constant 0 : index
    %171 = vector.load %arg10[%c0_72, %c0_73] : memref<32x32xbf16, #tpu.memory_space<vmem>>, vector<32x32xbf16>
    %172 = arith.truncf %170 : vector<8x32xf32> to vector<8x32xbf16>
    %cst_74 = arith.constant dense<0.000000e+00> : vector<8x32xf32>
    %173 = tpu.matmul %172, %171, %cst_74 {dimension_numbers = #tpu.dot_dimension_numbers<[1], [0], [0], [1], [0, 0, 1, 1], [], []>} : vector<8x32xbf16>, vector<32x32xbf16>, vector<8x32xf32> -> vector<8x32xf32>
    %c2_75 = arith.constant 2 : index
    %c0_76 = arith.constant 0 : index
    %174 = vector.load %arg8[%c2_75, %c0_76] : memref<3x32xf32, #tpu.memory_space<vmem>>, vector<1x32xf32>
    %175 = vector.broadcast %174 : vector<1x32xf32> to vector<8x32xf32>
    %176 = arith.addf %173, %175 : vector<8x32xf32>
    %cst_77 = arith.constant 0.000000e+00 : f32
    %177 = vector.broadcast %cst_77 : f32 to vector<8x32xf32>
    %178 = arith.maximumf %176, %177 : vector<8x32xf32>
    %c0_78 = arith.constant 0 : index
    %c0_79 = arith.constant 0 : index
    %179 = vector.load %arg11[%c0_78, %c0_79] : memref<32x4xbf16, #tpu.memory_space<vmem>>, vector<32x4xbf16>
    %180 = arith.truncf %178 : vector<8x32xf32> to vector<8x32xbf16>
    %cst_80 = arith.constant dense<0.000000e+00> : vector<8x4xf32>
    %181 = tpu.matmul %180, %179, %cst_80 {dimension_numbers = #tpu.dot_dimension_numbers<[1], [0], [0], [1], [0, 0, 1, 1], [], []>} : vector<8x32xbf16>, vector<32x4xbf16>, vector<8x4xf32> -> vector<8x4xf32>
    %c0_81 = arith.constant 0 : index
    %c0_82 = arith.constant 0 : index
    %182 = vector.load %arg12[%c0_81, %c0_82] : memref<1x4xf32, #tpu.memory_space<vmem>>, vector<1x4xf32>
    %183 = vector.broadcast %182 : vector<1x4xf32> to vector<8x4xf32>
    %184 = arith.addf %181, %183 : vector<8x4xf32>
    %c0_83 = arith.constant 0 : index
    %c0_84 = arith.constant 0 : index
    %185 = vector.load %arg13[%c0_83, %c0_84] : memref<8x4xf32, #tpu.memory_space<vmem>>, vector<8x4xf32>
    tpu.vector_store %arg13[%c0_83, %c0_84], %184 {strides = array<i32>} : memref<8x4xf32, #tpu.memory_space<vmem>>, vector<8x4xf32>,
    return
  }
}

</mosaic_0001>

<llo_original>
// kernel: tpu_custom_call.1
$region0: #{tpu_custom_call.1}
  #allocation0 [shape = 'u32[]', space=smem, size = 0x4, offset = 0x4, fixed_abs, tag = 'smem constant byte address 0x4 - core index']
  #allocation1 [shape = 'u32[144,128]{1,0:T(1,128)}', space=vmem, size = 0x12000, scoped, tag = 'internal scratch']
  #allocation2 [shape = 'bf16[16,16]{1,0:T(16,128)(2,1)}', space=vmem, size = 0x1000, scoped, tag = 'scratch operand']
  #allocation3 [shape = 'bf16[16,16]{1,0:T(16,128)(2,1)}', space=vmem, size = 0x1000, scoped, tag = 'scratch operand']
  #allocation4 [shape = 's32[2]{0}', space=sflag, size = 0x8, scoped, tag = 'scratch operand']
  #allocation24 [shape = 's32[]', space=sflag, size = 0x4, offset = 0, fixed_abs, tag = 'sflag constant byte address 0x0 - dummy sync flag']
  #allocation25 [shape = 's32[]', space=sflag, size = 0x4, offset = 0, fixed_abs, tag = 'sflag constant byte address 0x0 - dummy sync flag']
  #allocation26 [shape = 'u32[]', space=smem, size = 0x4, offset = 0x44, fixed_abs, tag = 'smem constant byte address 0x44 - assertion arg 0']
  #allocation27 [shape = 'u32[]', space=smem, size = 0x4, offset = 0x48, fixed_abs, tag = 'smem constant byte address 0x48 - assertion arg 1']
  #allocation28 [shape = 's32[]', space=sflag, size = 0x4, offset = 0, fixed_abs, tag = 'sflag constant byte address 0x0 - dummy sync flag']
  #allocation29 [shape = 's32[]', space=sflag, size = 0x4, offset = 0, fixed_abs, tag = 'sflag constant byte address 0x0 - dummy sync flag']
  %s0 = inlined_call_operand.hbm [shape: bf16[16,16], index: 0, kind: input, shape index: {}]
  %s1 = inlined_call_operand.hbm [shape: bf16[16,16], index: 1, kind: input, shape index: {}]
  %s2 = inlined_call_operand.hbm [shape: bf16[8,16], index: 2, kind: input, shape index: {}]
  %s3 = inlined_call_operand.hbm [shape: bf16[16,8], index: 3, kind: input, shape index: {}]
  %s4 = inlined_call_operand.hbm [shape: bf16[8,32], index: 4, kind: input, shape index: {}]
  %s5 = inlined_call_operand.hbm [shape: bf16[3,32,32], index: 5, kind: input, shape index: {}]
  %s6 = inlined_call_operand.hbm [shape: bf16[32,32], index: 6, kind: input, shape index: {}]
  %s7 = inlined_call_operand.hbm [shape: f32[4,3,32], index: 7, kind: input, shape index: {}]
  %s8 = inlined_call_operand.hbm [shape: f32[3,32], index: 8, kind: input, shape index: {}]
  %s9 = inlined_call_operand.hbm [shape: bf16[128,32], index: 9, kind: input, shape index: {}]
  %s10 = inlined_call_operand.hbm [shape: bf16[32,32], index: 10, kind: input, shape index: {}]
  %s11 = inlined_call_operand.hbm [shape: bf16[32,4], index: 11, kind: input, shape index: {}]
  %s12 = inlined_call_operand.hbm [shape: f32[1,4], index: 12, kind: input, shape index: {}]
  %s13 = inlined_call_operand.hbm [shape: f32[8,4], index: 13, kind: output, shape index: {}]
  %s14 = sld [smem:[#allocation0]]
  $region106: #{tpu_custom_call.1} parent=0
    _
  %s16 = ssub.s32 1, %s14
  %s17 = scalar_select 0, %s16, %s14
  $region1: #{tpu_custom_call.1} parent=0
    #allocation5 [shape = 'u8[2048]{0}', space=vmem, size = 0x800, scoped, tag = 'input window, operand 2, single buffered']
    #allocation6 [shape = 's32[1]{0}', space=sflag, size = 0x4, scoped, tag = 'scoped memory for tpu_custom_call.1']
    #allocation7 [shape = 's32[1]{0}', space=sflag, size = 0x4, scoped, tag = 'scoped memory for tpu_custom_call.1']
    #allocation8 [shape = 'u8[4096]{0}', space=vmem, size = 0x1000, scoped, tag = 'input window, operand 3, single buffered']
    #allocation9 [shape = 's32[1]{0}', space=sflag, size = 0x4, scoped, tag = 'scoped memory for tpu_custom_call.1']
    #allocation10 [shape = 'u8[2048]{0}', space=vmem, size = 0x800, scoped, tag = 'input window, operand 4, single buffered']
    #allocation11 [shape = 'u8[24576]{0}', space=vmem, size = 0x6000, scoped, tag = 'input window, operand 5, single buffered']
    #allocation12 [shape = 's32[1]{0}', space=sflag, size = 0x4, scoped, tag = 'scoped memory for tpu_custom_call.1']
    #allocation13 [shape = 'u8[8192]{0}', space=vmem, size = 0x2000, scoped, tag = 'input window, operand 6, single buffered']
    #allocation14 [shape = 'u8[8192]{0}', space=vmem, size = 0x2000, scoped, tag = 'input window, operand 7, single buffered']
    #allocation15 [shape = 's32[1]{0}', space=sflag, size = 0x4, scoped, tag = 'scoped memory for tpu_custom_call.1']
    #allocation16 [shape = 'u8[2048]{0}', space=vmem, size = 0x800, scoped, tag = 'input window, operand 8, single buffered']
    #allocation17 [shape = 'u8[32768]{0}', space=vmem, size = 0x8000, scoped, tag = 'input window, operand 9, single buffered']
    #allocation18 [shape = 's32[1]{0}', space=sflag, size = 0x4, scoped, tag = 'scoped memory for tpu_custom_call.1']
    #allocation19 [shape = 'u8[8192]{0}', space=vmem, size = 0x2000, scoped, tag = 'input window, operand 10, single buffered']
    #allocation20 [shape = 'u8[8192]{0}', space=vmem, size = 0x2000, scoped, tag = 'input window, operand 11, single buffered']
    #allocation21 [shape = 's32[1]{0}', space=sflag, size = 0x4, scoped, tag = 'scoped memory for tpu_custom_call.1']
    #allocation22 [shape = 'u8[512]{0}', space=vmem, size = 0x400, scoped, tag = 'input window, operand 12, single buffered']
    #allocation23 [shape = 'u8[4096]{0}', space=vmem, size = 0x1000, scoped, tag = 'output window, operand 0, single buffered']
    %18 = vsyncpa [#allocation6], 0
    %19 = vsyncpa [#allocation9], 0
    %20 = vsyncpa [#allocation12], 0
    %21 = vsyncpa [#allocation15], 0
    %22 = vsyncpa [#allocation18], 0
    %23 = vsyncpa [#allocation21], 0
    %24 = vsyncpa [#allocation7], 0
    // Predicated region
    $region2: #{tpu_custom_call.1} parent=1 // pred_check
      _
    $region3: #{tpu_custom_call.1} parent=1 // pred_check_branch
      %26 = sbr.rel (0) target = $region5
    $region4: #{tpu_custom_call.1} parent=1 // pred_region
      %s28 = ssub.s32 64, 64
      %29 = vsyncadd [#allocation6], %s28
      %s31 = sshll.u32 [#allocation5], 4
      %s32 = int_to_ptr.vmem [resolvable:$true] %s31
      %34 = dma.hbm_to_vmem [thread:$0]  %s2, 64, %s32, [#allocation6]
    $region5: #{tpu_custom_call.1} parent=1 // pred_fallthru
      _
    // Predicated region
    $region6: #{tpu_custom_call.1} parent=1 // pred_check
      _
    $region7: #{tpu_custom_call.1} parent=1 // pred_check_branch
      %36 = sbr.rel (0) target = $region9
    $region8: #{tpu_custom_call.1} parent=1 // pred_region
      %s38 = ssub.s32 128, 128
      %39 = vsyncadd [#allocation9], %s38
      %s40 = sshll.u32 [#allocation8], 4
      %s41 = int_to_ptr.vmem [resolvable:$true] %s40
      %46 = dma.hbm_to_vmem [thread:$0]  %s3, 128, %s41, [#allocation9], 64, 64, 4
    $region9: #{tpu_custom_call.1} parent=1 // pred_fallthru
      _
    // Predicated region
    $region10: #{tpu_custom_call.1} parent=1 // pred_check
      _
    $region11: #{tpu_custom_call.1} parent=1 // pred_check_branch
      %48 = sbr.rel (0) target = $region13
    $region12: #{tpu_custom_call.1} parent=1 // pred_region
      %s50 = ssub.s32 64, 64
      %51 = vsyncadd [#allocation9], %s50
      %s53 = sshll.u32 [#allocation10], 4
      %s54 = int_to_ptr.vmem [resolvable:$true] %s53
      %56 = dma.hbm_to_vmem [thread:$0]  %s4, 64, %s54, [#allocation9]
    $region13: #{tpu_custom_call.1} parent=1 // pred_fallthru
      _
    // Predicated region
    $region14: #{tpu_custom_call.1} parent=1 // pred_check
      _
    $region15: #{tpu_custom_call.1} parent=1 // pred_check_branch
      %58 = sbr.rel (0) target = $region17
    $region16: #{tpu_custom_call.1} parent=1 // pred_region
      %s60 = ssub.s32 768, 768
      %61 = vsyncadd [#allocation12], %s60
      %s62 = sshll.u32 [#allocation11], 4
      %s63 = int_to_ptr.vmem [resolvable:$true] %s62
      %68 = dma.hbm_to_vmem [thread:$0]  %s5, 768, %s63, [#allocation12], 64, 64, 4
    $region17: #{tpu_custom_call.1} parent=1 // pred_fallthru
      _
    // Predicated region
    $region18: #{tpu_custom_call.1} parent=1 // pred_check
      _
    $region19: #{tpu_custom_call.1} parent=1 // pred_check_branch
      %70 = sbr.rel (0) target = $region21
    $region20: #{tpu_custom_call.1} parent=1 // pred_region
      %s72 = ssub.s32 256, 256
      %73 = vsyncadd [#allocation12], %s72
      %s74 = sshll.u32 [#allocation13], 4
      %s75 = int_to_ptr.vmem [resolvable:$true] %s74
      %80 = dma.hbm_to_vmem [thread:$0]  %s6, 256, %s75, [#allocation12], 64, 64, 4
    $region21: #{tpu_custom_call.1} parent=1 // pred_fallthru
      _
    // Predicated region
    $region22: #{tpu_custom_call.1} parent=1 // pred_check
      _
    $region23: #{tpu_custom_call.1} parent=1 // pred_check_branch
      %82 = sbr.rel (0) target = $region25
    $region24: #{tpu_custom_call.1} parent=1 // pred_region
      %s84 = ssub.s32 256, 256
      %85 = vsyncadd [#allocation15], %s84
      %s86 = sshll.u32 [#allocation14], 4
      %s87 = int_to_ptr.vmem [resolvable:$true] %s86
      %92 = dma.hbm_to_vmem [thread:$0]  %s7, 256, %s87, [#allocation15], 64, 64, 4
    $region25: #{tpu_custom_call.1} parent=1 // pred_fallthru
      _
    // Predicated region
    $region26: #{tpu_custom_call.1} parent=1 // pred_check
      _
    $region27: #{tpu_custom_call.1} parent=1 // pred_check_branch
      %94 = sbr.rel (0) target = $region29
    $region28: #{tpu_custom_call.1} parent=1 // pred_region
      %s96 = ssub.s32 64, 64
      %97 = vsyncadd [#allocation15], %s96
      %s99 = sshll.u32 [#allocation16], 4
      %s100 = int_to_ptr.vmem [resolvable:$true] %s99
      %102 = dma.hbm_to_vmem [thread:$0]  %s8, 64, %s100, [#allocation15]
    $region29: #{tpu_custom_call.1} parent=1 // pred_fallthru
      _
    // Predicated region
    $region30: #{tpu_custom_call.1} parent=1 // pred_check
      _
    $region31: #{tpu_custom_call.1} parent=1 // pred_check_branch
      %104 = sbr.rel (0) target = $region33
    $region32: #{tpu_custom_call.1} parent=1 // pred_region
      %s106 = ssub.s32 1024, 1024
      %107 = vsyncadd [#allocation18], %s106
      %s108 = sshll.u32 [#allocation17], 4
      %s109 = int_to_ptr.vmem [resolvable:$true] %s108
      %114 = dma.hbm_to_vmem [thread:$0]  %s9, 1024, %s109, [#allocation18], 64, 64, 4
    $region33: #{tpu_custom_call.1} parent=1 // pred_fallthru
      _
    // Predicated region
    $region34: #{tpu_custom_call.1} parent=1 // pred_check
      _
    $region35: #{tpu_custom_call.1} parent=1 // pred_check_branch
      %116 = sbr.rel (0) target = $region37
    $region36: #{tpu_custom_call.1} parent=1 // pred_region
      %s118 = ssub.s32 256, 256
      %119 = vsyncadd [#allocation18], %s118
      %s120 = sshll.u32 [#allocation19], 4
      %s121 = int_to_ptr.vmem [resolvable:$true] %s120
      %126 = dma.hbm_to_vmem [thread:$0]  %s10, 256, %s121, [#allocation18], 64, 64, 4
    $region37: #{tpu_custom_call.1} parent=1 // pred_fallthru
      _
    // Predicated region
    $region38: #{tpu_custom_call.1} parent=1 // pred_check
      _
    $region39: #{tpu_custom_call.1} parent=1 // pred_check_branch
      %128 = sbr.rel (0) target = $region41
    $region40: #{tpu_custom_call.1} parent=1 // pred_region
      %s130 = ssub.s32 256, 256
      %131 = vsyncadd [#allocation21], %s130
      %s132 = sshll.u32 [#allocation20], 4
      %s133 = int_to_ptr.vmem [resolvable:$true] %s132
      %138 = dma.hbm_to_vmem [thread:$0]  %s11, 256, %s133, [#allocation21], 64, 64, 4
    $region41: #{tpu_custom_call.1} parent=1 // pred_fallthru
      _
    // Predicated region
    $region42: #{tpu_custom_call.1} parent=1 // pred_check
      _
    $region43: #{tpu_custom_call.1} parent=1 // pred_check_branch
      %140 = sbr.rel (0) target = $region45
    $region44: #{tpu_custom_call.1} parent=1 // pred_region
      %s142 = ssub.s32 16, 16
      %143 = vsyncadd [#allocation21], %s142
      %s145 = sshll.u32 [#allocation22], 4
      %s146 = int_to_ptr.vmem [resolvable:$true] %s145
      %148 = dma.hbm_to_vmem [thread:$0]  %s12, 16, %s146, [#allocation21]
    $region45: #{tpu_custom_call.1} parent=1 // pred_fallthru
      _
    // Predicated region
    $region46: #{tpu_custom_call.1} parent=1 // pred_check
      _
    $region47: #{tpu_custom_call.1} parent=1 // pred_check_branch
      %150 = sbr.rel (0) target = $region49
    $region48: #{tpu_custom_call.1} parent=1 // pred_region
      %151 = dma.done [#allocation6], 64
    $region49: #{tpu_custom_call.1} parent=1 // pred_fallthru
      _
    // Predicated region
    $region50: #{tpu_custom_call.1} parent=1 // pred_check
      _
    $region51: #{tpu_custom_call.1} parent=1 // pred_check_branch
      %153 = sbr.rel (0) target = $region53
    $region52: #{tpu_custom_call.1} parent=1 // pred_region
      %154 = dma.done [#allocation9], 128
    $region53: #{tpu_custom_call.1} parent=1 // pred_fallthru
      _
    // Predicated region
    $region54: #{tpu_custom_call.1} parent=1 // pred_check
      _
    $region55: #{tpu_custom_call.1} parent=1 // pred_check_branch
      %156 = sbr.rel (0) target = $region57
    $region56: #{tpu_custom_call.1} parent=1 // pred_region
      %157 = dma.done [#allocation9], 64
    $region57: #{tpu_custom_call.1} parent=1 // pred_fallthru
      _
    // Predicated region
    $region58: #{tpu_custom_call.1} parent=1 // pred_check
      _
    $region59: #{tpu_custom_call.1} parent=1 // pred_check_branch
      %159 = sbr.rel (0) target = $region61
    $region60: #{tpu_custom_call.1} parent=1 // pred_region
      %160 = dma.done [#allocation12], 768
    $region61: #{tpu_custom_call.1} parent=1 // pred_fallthru
      _
    // Predicated region
    $region62: #{tpu_custom_call.1} parent=1 // pred_check
      _
    $region63: #{tpu_custom_call.1} parent=1 // pred_check_branch
      %162 = sbr.rel (0) target = $region65
    $region64: #{tpu_custom_call.1} parent=1 // pred_region
      %163 = dma.done [#allocation12], 256
    $region65: #{tpu_custom_call.1} parent=1 // pred_fallthru
      _
    // Predicated region
    $region66: #{tpu_custom_call.1} parent=1 // pred_check
      _
    $region67: #{tpu_custom_call.1} parent=1 // pred_check_branch
      %165 = sbr.rel (0) target = $region69
    $region68: #{tpu_custom_call.1} parent=1 // pred_region
      %166 = dma.done [#allocation15], 256
    $region69: #{tpu_custom_call.1} parent=1 // pred_fallthru
      _
    // Predicated region
    $region70: #{tpu_custom_call.1} parent=1 // pred_check
      _
    $region71: #{tpu_custom_call.1} parent=1 // pred_check_branch
      %168 = sbr.rel (0) target = $region73
    $region72: #{tpu_custom_call.1} parent=1 // pred_region
      %169 = dma.done [#allocation15], 64
    $region73: #{tpu_custom_call.1} parent=1 // pred_fallthru
      _
    // Predicated region
    $region74: #{tpu_custom_call.1} parent=1 // pred_check
      _
    $region75: #{tpu_custom_call.1} parent=1 // pred_check_branch
      %171 = sbr.rel (0) target = $region77
    $region76: #{tpu_custom_call.1} parent=1 // pred_region
      %172 = dma.done [#allocation18], 1024
    $region77: #{tpu_custom_call.1} parent=1 // pred_fallthru
      _
    // Predicated region
    $region78: #{tpu_custom_call.1} parent=1 // pred_check
      _
    $region79: #{tpu_custom_call.1} parent=1 // pred_check_branch
      %174 = sbr.rel (0) target = $region81
    $region80: #{tpu_custom_call.1} parent=1 // pred_region
      %175 = dma.done [#allocation18], 256
    $region81: #{tpu_custom_call.1} parent=1 // pred_fallthru
      _
    // Predicated region
    $region82: #{tpu_custom_call.1} parent=1 // pred_check
      _
    $region83: #{tpu_custom_call.1} parent=1 // pred_check_branch
      %177 = sbr.rel (0) target = $region85
    $region84: #{tpu_custom_call.1} parent=1 // pred_region
      %178 = dma.done [#allocation21], 256
    $region85: #{tpu_custom_call.1} parent=1 // pred_fallthru
      _
    // Predicated region
    $region86: #{tpu_custom_call.1} parent=1 // pred_check
      _
    $region87: #{tpu_custom_call.1} parent=1 // pred_check_branch
      %180 = sbr.rel (0) target = $region89
    $region88: #{tpu_custom_call.1} parent=1 // pred_region
      %181 = dma.done [#allocation21], 16
    $region89: #{tpu_custom_call.1} parent=1 // pred_fallthru
      _
    // Predicated region
    $region90: #{tpu_custom_call.1} parent=1 // pred_check
      _
    $region91: #{tpu_custom_call.1} parent=1 // pred_check_branch
      %184 = sbr.rel target = $region93
    $region92: #{tpu_custom_call.1} parent=1 // pred_region
      %185 = sst [smem:[#allocation26]] [#allocation25]
      %186 = sst [smem:[#allocation27]] [#allocation24]
    $region93: #{tpu_custom_call.1} parent=1 // pred_fallthru
      _
    %188 = shalt.err (0)
    %s190 = sshll.u32 [#allocation2], 4
    %s191 = int_to_ptr.vmem [resolvable:$true] %s190
    %193 = dma.hbm_to_vmem [thread:$0]  %s0, 128, %s191, [#allocation4]
    %s194 = scalar_lea.sflag [#allocation4], 1
    // Predicated region
    $region94: #{tpu_custom_call.1} parent=1 // pred_check
      _
    $region95: #{tpu_custom_call.1} parent=1 // pred_check_branch
      %196 = sbr.rel target = $region97
    $region96: #{tpu_custom_call.1} parent=1 // pred_region
      %197 = sst [smem:[#allocation26]] [#allocation29]
      %198 = sst [smem:[#allocation27]] [#allocation28]
    $region97: #{tpu_custom_call.1} parent=1 // pred_fallthru
      _
    %200 = shalt.err (0)
    %s202 = sshll.u32 [#allocation3], 4
    %s203 = int_to_ptr.vmem [resolvable:$true] %s202
    %205 = dma.hbm_to_vmem [thread:$0]  %s1, 128, %s203, %s194
    %v206 = vld [vmem:[#allocation8] sm:$0xf]
    %v207 = vld [vmem:[#allocation8 + $0x4] sm:$0xf]
    %v208 = vld [vmem:[#allocation10] sm:$0xf]
    %v209 = vld [vmem:[#allocation16] sm:$0x1]
    %v210 = vlaneseq
    %v211 = vshrl.u32 %v210, 7
    %v212 = vsub.s32 0, %v211
    %v213 = vrot.slane %v209, %v212
    %v216 = vunpack.c.l.b16 %v206
    %v217 = vunpack.c.l.b16 %v207
    %v218 = vpack.c.b16 %v217, %v216
    %vm219 = vcmask 64512
    %v221 = vsel %vm219, %v218, 0
    %vm223 = vcmask 1043456
    %v225 = vsel %vm223, %v208, 0
    %227 = vmatprep.subr.bf16.mxu0 0
    %228 = vmatpush1.bf16.msra.mxu0 %v225
    %229 = vmatprep.subr.bf16.mxu0 0
    %230 = vmatpush1.bf16.msra.mxu0 0
    %231 = vmatprep.subr.bf16.mxu0 0
    %232 = vmatpush1.bf16.msra.mxu0 0
    %233 = vmatprep.subr.bf16.mxu0 0
    %234 = vmatpush1.bf16.msra.mxu0 0
    %235 = vmatprep.subr.bf16.mxu0 0
    %236 = vmatpush1.bf16.msra.mxu0 0
    %237 = vmatprep.subr.bf16.mxu0 0
    %238 = vmatpush1.bf16.msra.mxu0 0
    %239 = vmatprep.subr.bf16.mxu0 0
    %240 = vmatpush1.bf16.msra.mxu0 0
    %241 = vmatprep.subr.bf16.mxu0 0
    %242 = vmatpush1.bf16.msra.mxu0 0
    %243 = vmatprep.subr.bf16.mxu0 0
    %244 = vmatpush1.bf16.msra.mxu0 0
    %245 = vmatprep.subr.bf16.mxu0 0
    %246 = vmatpush1.bf16.msra.mxu0 0
    %247 = vmatprep.subr.bf16.mxu0 0
    %248 = vmatpush1.bf16.msra.mxu0 0
    %249 = vmatprep.subr.bf16.mxu0 0
    %250 = vmatpush1.bf16.msra.mxu0 0
    %251 = vmatprep.subr.bf16.mxu0 0
    %252 = vmatpush1.bf16.msra.mxu0 0
    %253 = vmatprep.subr.bf16.mxu0 0
    %254 = vmatpush1.bf16.msra.mxu0 0
    %255 = vmatprep.subr.bf16.mxu0 0
    %256 = vmatpush1.bf16.msra.mxu0 0
    %257 = vmatprep.subr.bf16.mxu0 0
    %258 = vmatpush1.bf16.msra.mxu0 0
    %259 = vmatprep.mubr.bf16.mxu0 0
    %260 = vmatmul.mubr.bf16.gmra.mrb[0].mxu0 %v221
    %v261 = vpop.f32.mrb[0].mxu0
    %v262 = vadd.f32 %v213, %v261
    %v263 = vpop.f32.mrb[0].mxu0
    %v264 = vpop.f32.mrb[0].mxu0
    %v265 = vadd.f32 %v213, %v264
    %v266 = vpop.f32.mrb[0].mxu0
    %267 = vdwg.mxu0
    %v268 = vld [vmem:[#allocation11] sm:$0xf]
    %v269 = vld [vmem:[#allocation11 + $0x4] sm:$0xf]
    %v270 = vld [vmem:[#allocation11 + $0x8] sm:$0xf]
    %v271 = vld [vmem:[#allocation11 + $0xc] sm:$0xf]
    %v272 = vpack.c.bf16 %v265, %v262
    %v277 = vunpack.c.l.b16 %v268
    %v278 = vunpack.c.l.b16 %v269
    %v279 = vunpack.c.l.b16 %v270
    %v280 = vunpack.c.l.b16 %v271
    %v281 = vpack.c.b16 %v278, %v277
    %v282 = vpack.c.b16 %v280, %v279
    %vm285 = vcmask 261120
    %v287 = vsel %vm285, %v272, 0
    %289 = vmatprep.subr.bf16.mxu0 0
    %290 = vmatpush1.bf16.msra.mxu0 %v281
    %291 = vmatprep.subr.bf16.mxu0 0
    %292 = vmatpush1.bf16.msra.mxu0 %v282
    %293 = vmatprep.subr.bf16.mxu0 0
    %294 = vmatpush1.bf16.msra.mxu0 0
    %295 = vmatprep.subr.bf16.mxu0 0
    %296 = vmatpush1.bf16.msra.mxu0 0
    %297 = vmatprep.subr.bf16.mxu0 0
    %298 = vmatpush1.bf16.msra.mxu0 0
    %299 = vmatprep.subr.bf16.mxu0 0
    %300 = vmatpush1.bf16.msra.mxu0 0
    %301 = vmatprep.subr.bf16.mxu0 0
    %302 = vmatpush1.bf16.msra.mxu0 0
    %303 = vmatprep.subr.bf16.mxu0 0
    %304 = vmatpush1.bf16.msra.mxu0 0
    %305 = vmatprep.subr.bf16.mxu0 0
    %306 = vmatpush1.bf16.msra.mxu0 0
    %307 = vmatprep.subr.bf16.mxu0 0
    %308 = vmatpush1.bf16.msra.mxu0 0
    %309 = vmatprep.subr.bf16.mxu0 0
    %310 = vmatpush1.bf16.msra.mxu0 0
    %311 = vmatprep.subr.bf16.mxu0 0
    %312 = vmatpush1.bf16.msra.mxu0 0
    %313 = vmatprep.subr.bf16.mxu0 0
    %314 = vmatpush1.bf16.msra.mxu0 0
    %315 = vmatprep.subr.bf16.mxu0 0
    %316 = vmatpush1.bf16.msra.mxu0 0
    %317 = vmatprep.subr.bf16.mxu0 0
    %318 = vmatpush1.bf16.msra.mxu0 0
    %319 = vmatprep.subr.bf16.mxu0 0
    %320 = vmatpush1.bf16.msra.mxu0 0
    %321 = vmatprep.mubr.bf16.mxu0 0
    %322 = vmatmul.mubr.bf16.gmra.mrb[0].mxu0 %v287
    %v323 = vpop.f32.mrb[0].mxu0
    %v324 = vadd.f32 0.0, %v323
    %v325 = vpop.f32.mrb[0].mxu0
    %v326 = vpop.f32.mrb[0].mxu0
    %v327 = vadd.f32 0.0, %v326
    %v328 = vpop.f32.mrb[0].mxu0
    %329 = vdwg.mxu0
    %v330 = vld [vmem:[#allocation13] sm:$0xf]
    %v331 = vld [vmem:[#allocation13 + $0x4] sm:$0xf]
    %v332 = vld [vmem:[#allocation13 + $0x8] sm:$0xf]
    %v333 = vld [vmem:[#allocation13 + $0xc] sm:$0xf]
    %v338 = vunpack.c.l.b16 %v330
    %v339 = vunpack.c.l.b16 %v331
    %v340 = vunpack.c.l.b16 %v332
    %v341 = vunpack.c.l.b16 %v333
    %v342 = vpack.c.b16 %v339, %v338
    %v343 = vpack.c.b16 %v341, %v340
    %346 = vmatprep.subr.bf16.mxu0 0
    %347 = vmatpush1.bf16.msra.mxu0 %v342
    %348 = vmatprep.subr.bf16.mxu0 0
    %349 = vmatpush1.bf16.msra.mxu0 %v343
    %350 = vmatprep.subr.bf16.mxu0 0
    %351 = vmatpush1.bf16.msra.mxu0 0
    %352 = vmatprep.subr.bf16.mxu0 0
    %353 = vmatpush1.bf16.msra.mxu0 0
    %354 = vmatprep.subr.bf16.mxu0 0
    %355 = vmatpush1.bf16.msra.mxu0 0
    %356 = vmatprep.subr.bf16.mxu0 0
    %357 = vmatpush1.bf16.msra.mxu0 0
    %358 = vmatprep.subr.bf16.mxu0 0
    %359 = vmatpush1.bf16.msra.mxu0 0
    %360 = vmatprep.subr.bf16.mxu0 0
    %361 = vmatpush1.bf16.msra.mxu0 0
    %362 = vmatprep.subr.bf16.mxu0 0
    %363 = vmatpush1.bf16.msra.mxu0 0
    %364 = vmatprep.subr.bf16.mxu0 0
    %365 = vmatpush1.bf16.msra.mxu0 0
    %366 = vmatprep.subr.bf16.mxu0 0
    %367 = vmatpush1.bf16.msra.mxu0 0
    %368 = vmatprep.subr.bf16.mxu0 0
    %369 = vmatpush1.bf16.msra.mxu0 0
    %370 = vmatprep.subr.bf16.mxu0 0
    %371 = vmatpush1.bf16.msra.mxu0 0
    %372 = vmatprep.subr.bf16.mxu0 0
    %373 = vmatpush1.bf16.msra.mxu0 0
    %374 = vmatprep.subr.bf16.mxu0 0
    %375 = vmatpush1.bf16.msra.mxu0 0
    %376 = vmatprep.subr.bf16.mxu0 0
    %377 = vmatpush1.bf16.msra.mxu0 0
    %378 = vmatprep.mubr.bf16.mxu0 0
    %379 = vmatmul.mubr.bf16.gmra.mrb[0].mxu0 %v287
    %v380 = vpop.f32.mrb[0].mxu0
    %v381 = vadd.f32 0.0, %v380
    %v382 = vpop.f32.mrb[0].mxu0
    %v383 = vpop.f32.mrb[0].mxu0
    %v384 = vadd.f32 0.0, %v383
    %v385 = vpop.f32.mrb[0].mxu0
    %386 = vdwg.mxu0
    %s387 = smul.u32 4, 2
    %s388 = smul.u32 %s387, 1
    %s389 = sshll.u32 %s388, 4
    %390 = dma.done [#allocation4], %s389
    %v391 = vld [vmem:[#allocation2] sm:$0xff]
    %v392 = vld [vmem:[#allocation14] sm:$0x7]
    %v393 = vpack.c.bf16 %v327, %v324
    %v394 = vlaneseq
    %v395 = vshrl.u32 %v394, 7
    %v396 = vsub.s32 0, %v395
    %v397 = vrot.slane %v392, %v396
    %vm398 = vcmask 130048
    %v400 = vsel %vm398, %v391, 0
    %402 = vmatprep.subr.bf16.mxu0 0
    %403 = vmatpush1.bf16.msra.mxu0 %v393
    %404 = vmatprep.subr.bf16.mxu0 0
    %405 = vmatpush1.bf16.msra.mxu0 0
    %406 = vmatprep.subr.bf16.mxu0 0
    %407 = vmatpush1.bf16.msra.mxu0 0
    %408 = vmatprep.subr.bf16.mxu0 0
    %409 = vmatpush1.bf16.msra.mxu0 0
    %410 = vmatprep.subr.bf16.mxu0 0
    %411 = vmatpush1.bf16.msra.mxu0 0
    %412 = vmatprep.subr.bf16.mxu0 0
    %413 = vmatpush1.bf16.msra.mxu0 0
    %414 = vmatprep.subr.bf16.mxu0 0
    %415 = vmatpush1.bf16.msra.mxu0 0
    %416 = vmatprep.subr.bf16.mxu0 0
    %417 = vmatpush1.bf16.msra.mxu0 0
    %418 = vmatprep.subr.bf16.mxu0 0
    %419 = vmatpush1.bf16.msra.mxu0 0
    %420 = vmatprep.subr.bf16.mxu0 0
    %421 = vmatpush1.bf16.msra.mxu0 0
    %422 = vmatprep.subr.bf16.mxu0 0
    %423 = vmatpush1.bf16.msra.mxu0 0
    %424 = vmatprep.subr.bf16.mxu0 0
    %425 = vmatpush1.bf16.msra.mxu0 0
    %426 = vmatprep.subr.bf16.mxu0 0
    %427 = vmatpush1.bf16.msra.mxu0 0
    %428 = vmatprep.subr.bf16.mxu0 0
    %429 = vmatpush1.bf16.msra.mxu0 0
    %430 = vmatprep.subr.bf16.mxu0 0
    %431 = vmatpush1.bf16.msra.mxu0 0
    %432 = vmatprep.subr.bf16.mxu0 0
    %433 = vmatpush1.bf16.msra.mxu0 0
    %434 = vmatprep.mubr.bf16.mxu0 0
    %435 = vmatmul.mubr.bf16.gmra.mrb[0].mxu0 %v400
    %v436 = vpop.f32.mrb[0].mxu0
    %v437 = vadd.f32 %v397, %v436
    %v438 = vpop.f32.mrb[0].mxu0
    %v439 = vpop.f32.mrb[0].mxu0
    %v440 = vadd.f32 %v397, %v439
    %v441 = vpop.f32.mrb[0].mxu0
    %442 = vdwg.mxu0
    %v443 = vsel %vm285, %v437, 0.0
    %v444 = vsel %vm285, %v440, 0.0
    %v445 = vadd.f32 %v443, %v444
    %v446 = vrot.slane %v445, 4
    %v447 = vadd.f32 %v445, %v446
    %v448 = vrot.slane %v447, 2
    %v449 = vadd.f32 %v447, %v448
    %v450 = vrot.slane %v449, 1
    %v451 = vadd.f32 %v449, %v450
    %v452 = vmul.f32 %v451, 0.0625
    %v453 = vsub.f32 %v437, %v452
    %v454 = vsub.f32 %v440, %v452
    %v455 = vmul.f32 %v453, %v453
    %v456 = vmul.f32 %v454, %v454
    %v457 = vsel %vm285, %v455, 0.0
    %v458 = vsel %vm285, %v456, 0.0
    %v459 = vadd.f32 %v457, %v458
    %v460 = vrot.slane %v459, 4
    %v461 = vadd.f32 %v459, %v460
    %v462 = vrot.slane %v461, 2
    %v463 = vadd.f32 %v461, %v462
    %v464 = vrot.slane %v463, 1
    %v465 = vadd.f32 %v463, %v464
    %v466 = vmul.f32 %v465, 0.0625
    %v467 = vadd.f32 %v466, 1e-05
    %v468 = vrsqrt.pop %v467
    %v469 = vmul.f32 %v453, %v468
    %v470 = vmul.f32 %v454, %v468
    %v471 = vlaneseq
    %v472 = vshrl.u32 %v471, 7
    %v473 = vsub.s32 1, %v472
    %v474 = vrot.slane %v392, %v473
    %v475 = vmul.f32 %v474, %v469
    %v476 = vmul.f32 %v474, %v470
    %v477 = vlaneseq
    %v478 = vshrl.u32 %v477, 7
    %v479 = vsub.s32 2, %v478
    %v480 = vrot.slane %v392, %v479
    %v481 = vadd.f32 %v475, %v480
    %v482 = vadd.f32 %v476, %v480
    %v483 = vmax.f32 %v481, 0.0
    %v484 = vmax.f32 %v482, 0.0
    %v485 = vadd.f32 %v483, %v262
    %v486 = vadd.f32 %v484, %v265
    %s487 = scalar_lea.vmem [#allocation14], 4
    %v488 = vld [vmem:[%s487] sm:$0x7]
    %s489 = scalar_lea.vmem [#allocation11], 16
    %v490 = vld [vmem:[%s489] sm:$0xf]
    %v491 = vld [vmem:[%s489 + $0x4] sm:$0xf]
    %v492 = vld [vmem:[%s489 + $0x8] sm:$0xf]
    %v493 = vld [vmem:[%s489 + $0xc] sm:$0xf]
    %v494 = vpack.c.bf16 %v486, %v485
    %v499 = vunpack.c.l.b16 %v490
    %v500 = vunpack.c.l.b16 %v491
    %v501 = vunpack.c.l.b16 %v492
    %v502 = vunpack.c.l.b16 %v493
    %v503 = vpack.c.b16 %v500, %v499
    %v504 = vpack.c.b16 %v502, %v501
    %v508 = vsel %vm285, %v494, 0
    %510 = vmatprep.subr.bf16.mxu0 0
    %511 = vmatpush1.bf16.msra.mxu0 %v503
    %512 = vmatprep.subr.bf16.mxu0 0
    %513 = vmatpush1.bf16.msra.mxu0 %v504
    %514 = vmatprep.subr.bf16.mxu0 0
    %515 = vmatpush1.bf16.msra.mxu0 0
    %516 = vmatprep.subr.bf16.mxu0 0
    %517 = vmatpush1.bf16.msra.mxu0 0
    %518 = vmatprep.subr.bf16.mxu0 0
    %519 = vmatpush1.bf16.msra.mxu0 0
    %520 = vmatprep.subr.bf16.mxu0 0
    %521 = vmatpush1.bf16.msra.mxu0 0
    %522 = vmatprep.subr.bf16.mxu0 0
    %523 = vmatpush1.bf16.msra.mxu0 0
    %524 = vmatprep.subr.bf16.mxu0 0
    %525 = vmatpush1.bf16.msra.mxu0 0
    %526 = vmatprep.subr.bf16.mxu0 0
    %527 = vmatpush1.bf16.msra.mxu0 0
    %528 = vmatprep.subr.bf16.mxu0 0
    %529 = vmatpush1.bf16.msra.mxu0 0
    %530 = vmatprep.subr.bf16.mxu0 0
    %531 = vmatpush1.bf16.msra.mxu0 0
    %532 = vmatprep.subr.bf16.mxu0 0
    %533 = vmatpush1.bf16.msra.mxu0 0
    %534 = vmatprep.subr.bf16.mxu0 0
    %535 = vmatpush1.bf16.msra.mxu0 0
    %536 = vmatprep.subr.bf16.mxu0 0
    %537 = vmatpush1.bf16.msra.mxu0 0
    %538 = vmatprep.subr.bf16.mxu0 0
    %539 = vmatpush1.bf16.msra.mxu0 0
    %540 = vmatprep.subr.bf16.mxu0 0
    %541 = vmatpush1.bf16.msra.mxu0 0
    %542 = vmatprep.mubr.bf16.mxu0 0
    %543 = vmatmul.mubr.bf16.gmra.mrb[0].mxu0 %v508
    %v544 = vpop.f32.mrb[0].mxu0
    %v545 = vadd.f32 0.0, %v544
    %v546 = vpop.f32.mrb[0].mxu0
    %v547 = vpop.f32.mrb[0].mxu0
    %v548 = vadd.f32 0.0, %v547
    %v549 = vpop.f32.mrb[0].mxu0
    %550 = vdwg.mxu0
    %v551 = vpack.c.bf16 %v548, %v545
    %v552 = vlaneseq
    %v553 = vshrl.u32 %v552, 7
    %v554 = vsub.s32 0, %v553
    %v555 = vrot.slane %v488, %v554
    %556 = vmatprep.subr.bf16.mxu0 0
    %557 = vmatpush1.bf16.msra.mxu0 %v551
    %558 = vmatprep.subr.bf16.mxu0 0
    %559 = vmatpush1.bf16.msra.mxu0 0
    %560 = vmatprep.subr.bf16.mxu0 0
    %561 = vmatpush1.bf16.msra.mxu0 0
    %562 = vmatprep.subr.bf16.mxu0 0
    %563 = vmatpush1.bf16.msra.mxu0 0
    %564 = vmatprep.subr.bf16.mxu0 0
    %565 = vmatpush1.bf16.msra.mxu0 0
    %566 = vmatprep.subr.bf16.mxu0 0
    %567 = vmatpush1.bf16.msra.mxu0 0
    %568 = vmatprep.subr.bf16.mxu0 0
    %569 = vmatpush1.bf16.msra.mxu0 0
    %570 = vmatprep.subr.bf16.mxu0 0
    %571 = vmatpush1.bf16.msra.mxu0 0
    %572 = vmatprep.subr.bf16.mxu0 0
    %573 = vmatpush1.bf16.msra.mxu0 0
    %574 = vmatprep.subr.bf16.mxu0 0
    %575 = vmatpush1.bf16.msra.mxu0 0
    %576 = vmatprep.subr.bf16.mxu0 0
    %577 = vmatpush1.bf16.msra.mxu0 0
    %578 = vmatprep.subr.bf16.mxu0 0
    %579 = vmatpush1.bf16.msra.mxu0 0
    %580 = vmatprep.subr.bf16.mxu0 0
    %581 = vmatpush1.bf16.msra.mxu0 0
    %582 = vmatprep.subr.bf16.mxu0 0
    %583 = vmatpush1.bf16.msra.mxu0 0
    %584 = vmatprep.subr.bf16.mxu0 0
    %585 = vmatpush1.bf16.msra.mxu0 0
    %586 = vmatprep.subr.bf16.mxu0 0
    %587 = vmatpush1.bf16.msra.mxu0 0
    %588 = vmatprep.mubr.bf16.mxu0 0
    %589 = vmatmul.mubr.bf16.gmra.mrb[0].mxu0 %v400
    %v590 = vpop.f32.mrb[0].mxu0
    %v591 = vadd.f32 %v555, %v590
    %v592 = vpop.f32.mrb[0].mxu0
    %v593 = vpop.f32.mrb[0].mxu0
    %v594 = vadd.f32 %v555, %v593
    %v595 = vpop.f32.mrb[0].mxu0
    %596 = vdwg.mxu0
    %v597 = vsel %vm285, %v591, 0.0
    %v598 = vsel %vm285, %v594, 0.0
    %v599 = vadd.f32 %v597, %v598
    %v600 = vrot.slane %v599, 4
    %v601 = vadd.f32 %v599, %v600
    %v602 = vrot.slane %v601, 2
    %v603 = vadd.f32 %v601, %v602
    %v604 = vrot.slane %v603, 1
    %v605 = vadd.f32 %v603, %v604
    %v606 = vmul.f32 %v605, 0.0625
    %v607 = vsub.f32 %v591, %v606
    %v608 = vsub.f32 %v594, %v606
    %v609 = vmul.f32 %v607, %v607
    %v610 = vmul.f32 %v608, %v608
    %v611 = vsel %vm285, %v609, 0.0
    %v612 = vsel %vm285, %v610, 0.0
    %v613 = vadd.f32 %v611, %v612
    %v614 = vrot.slane %v613, 4
    %v615 = vadd.f32 %v613, %v614
    %v616 = vrot.slane %v615, 2
    %v617 = vadd.f32 %v615, %v616
    %v618 = vrot.slane %v617, 1
    %v619 = vadd.f32 %v617, %v618
    %v620 = vmul.f32 %v619, 0.0625
    %v621 = vadd.f32 %v620, 1e-05
    %v622 = vrsqrt.pop %v621
    %v623 = vmul.f32 %v607, %v622
    %v624 = vmul.f32 %v608, %v622
    %v625 = vlaneseq
    %v626 = vshrl.u32 %v625, 7
    %v627 = vsub.s32 1, %v626
    %v628 = vrot.slane %v488, %v627
    %v629 = vmul.f32 %v628, %v623
    %v630 = vmul.f32 %v628, %v624
    %v631 = vlaneseq
    %v632 = vshrl.u32 %v631, 7
    %v633 = vsub.s32 2, %v632
    %v634 = vrot.slane %v488, %v633
    %v635 = vadd.f32 %v629, %v634
    %v636 = vadd.f32 %v630, %v634
    %v637 = vmax.f32 %v635, 0.0
    %v638 = vmax.f32 %v636, 0.0
    %v639 = vadd.f32 %v637, %v485
    %v640 = vadd.f32 %v638, %v486
    %s641 = scalar_lea.vmem [#allocation14], 8
    %v642 = vld [vmem:[%s641] sm:$0x7]
    %s643 = scalar_lea.vmem [#allocation11], 32
    %v644 = vld [vmem:[%s643] sm:$0xf]
    %v645 = vld [vmem:[%s643 + $0x4] sm:$0xf]
    %v646 = vld [vmem:[%s643 + $0x8] sm:$0xf]
    %v647 = vld [vmem:[%s643 + $0xc] sm:$0xf]
    %v648 = vpack.c.bf16 %v640, %v639
    %v653 = vunpack.c.l.b16 %v644
    %v654 = vunpack.c.l.b16 %v645
    %v655 = vunpack.c.l.b16 %v646
    %v656 = vunpack.c.l.b16 %v647
    %v657 = vpack.c.b16 %v654, %v653
    %v658 = vpack.c.b16 %v656, %v655
    %v662 = vsel %vm285, %v648, 0
    %664 = vmatprep.subr.bf16.mxu0 0
    %665 = vmatpush1.bf16.msra.mxu0 %v657
    %666 = vmatprep.subr.bf16.mxu0 0
    %667 = vmatpush1.bf16.msra.mxu0 %v658
    %668 = vmatprep.subr.bf16.mxu0 0
    %669 = vmatpush1.bf16.msra.mxu0 0
    %670 = vmatprep.subr.bf16.mxu0 0
    %671 = vmatpush1.bf16.msra.mxu0 0
    %672 = vmatprep.subr.bf16.mxu0 0
    %673 = vmatpush1.bf16.msra.mxu0 0
    %674 = vmatprep.subr.bf16.mxu0 0
    %675 = vmatpush1.bf16.msra.mxu0 0
    %676 = vmatprep.subr.bf16.mxu0 0
    %677 = vmatpush1.bf16.msra.mxu0 0
    %678 = vmatprep.subr.bf16.mxu0 0
    %679 = vmatpush1.bf16.msra.mxu0 0
    %680 = vmatprep.subr.bf16.mxu0 0
    %681 = vmatpush1.bf16.msra.mxu0 0
    %682 = vmatprep.subr.bf16.mxu0 0
    %683 = vmatpush1.bf16.msra.mxu0 0
    %684 = vmatprep.subr.bf16.mxu0 0
    %685 = vmatpush1.bf16.msra.mxu0 0
    %686 = vmatprep.subr.bf16.mxu0 0
    %687 = vmatpush1.bf16.msra.mxu0 0
    %688 = vmatprep.subr.bf16.mxu0 0
    %689 = vmatpush1.bf16.msra.mxu0 0
    %690 = vmatprep.subr.bf16.mxu0 0
    %691 = vmatpush1.bf16.msra.mxu0 0
    %692 = vmatprep.subr.bf16.mxu0 0
    %693 = vmatpush1.bf16.msra.mxu0 0
    %694 = vmatprep.subr.bf16.mxu0 0
    %695 = vmatpush1.bf16.msra.mxu0 0
    %696 = vmatprep.mubr.bf16.mxu0 0
    %697 = vmatmul.mubr.bf16.gmra.mrb[0].mxu0 %v662
    %v698 = vpop.f32.mrb[0].mxu0
    %v699 = vadd.f32 0.0, %v698
    %v700 = vpop.f32.mrb[0].mxu0
    %v701 = vpop.f32.mrb[0].mxu0
    %v702 = vadd.f32 0.0, %v701
    %v703 = vpop.f32.mrb[0].mxu0
    %704 = vdwg.mxu0
    %v705 = vpack.c.bf16 %v702, %v699
    %v706 = vlaneseq
    %v707 = vshrl.u32 %v706, 7
    %v708 = vsub.s32 0, %v707
    %v709 = vrot.slane %v642, %v708
    %710 = vmatprep.subr.bf16.mxu0 0
    %711 = vmatpush1.bf16.msra.mxu0 %v705
    %712 = vmatprep.subr.bf16.mxu0 0
    %713 = vmatpush1.bf16.msra.mxu0 0
    %714 = vmatprep.subr.bf16.mxu0 0
    %715 = vmatpush1.bf16.msra.mxu0 0
    %716 = vmatprep.subr.bf16.mxu0 0
    %717 = vmatpush1.bf16.msra.mxu0 0
    %718 = vmatprep.subr.bf16.mxu0 0
    %719 = vmatpush1.bf16.msra.mxu0 0
    %720 = vmatprep.subr.bf16.mxu0 0
    %721 = vmatpush1.bf16.msra.mxu0 0
    %722 = vmatprep.subr.bf16.mxu0 0
    %723 = vmatpush1.bf16.msra.mxu0 0
    %724 = vmatprep.subr.bf16.mxu0 0
    %725 = vmatpush1.bf16.msra.mxu0 0
    %726 = vmatprep.subr.bf16.mxu0 0
    %727 = vmatpush1.bf16.msra.mxu0 0
    %728 = vmatprep.subr.bf16.mxu0 0
    %729 = vmatpush1.bf16.msra.mxu0 0
    %730 = vmatprep.subr.bf16.mxu0 0
    %731 = vmatpush1.bf16.msra.mxu0 0
    %732 = vmatprep.subr.bf16.mxu0 0
    %733 = vmatpush1.bf16.msra.mxu0 0
    %734 = vmatprep.subr.bf16.mxu0 0
    %735 = vmatpush1.bf16.msra.mxu0 0
    %736 = vmatprep.subr.bf16.mxu0 0
    %737 = vmatpush1.bf16.msra.mxu0 0
    %738 = vmatprep.subr.bf16.mxu0 0
    %739 = vmatpush1.bf16.msra.mxu0 0
    %740 = vmatprep.subr.bf16.mxu0 0
    %741 = vmatpush1.bf16.msra.mxu0 0
    %742 = vmatprep.mubr.bf16.mxu0 0
    %743 = vmatmul.mubr.bf16.gmra.mrb[0].mxu0 %v400
    %v744 = vpop.f32.mrb[0].mxu0
    %v745 = vadd.f32 %v709, %v744
    %v746 = vpop.f32.mrb[0].mxu0
    %v747 = vpop.f32.mrb[0].mxu0
    %v748 = vadd.f32 %v709, %v747
    %v749 = vpop.f32.mrb[0].mxu0
    %750 = vdwg.mxu0
    %v751 = vsel %vm285, %v745, 0.0
    %v752 = vsel %vm285, %v748, 0.0
    %v753 = vadd.f32 %v751, %v752
    %v754 = vrot.slane %v753, 4
    %v755 = vadd.f32 %v753, %v754
    %v756 = vrot.slane %v755, 2
    %v757 = vadd.f32 %v755, %v756
    %v758 = vrot.slane %v757, 1
    %v759 = vadd.f32 %v757, %v758
    %v760 = vmul.f32 %v759, 0.0625
    %v761 = vsub.f32 %v745, %v760
    %v762 = vsub.f32 %v748, %v760
    %v763 = vmul.f32 %v761, %v761
    %v764 = vmul.f32 %v762, %v762
    %v765 = vsel %vm285, %v763, 0.0
    %v766 = vsel %vm285, %v764, 0.0
    %v767 = vadd.f32 %v765, %v766
    %v768 = vrot.slane %v767, 4
    %v769 = vadd.f32 %v767, %v768
    %v770 = vrot.slane %v769, 2
    %v771 = vadd.f32 %v769, %v770
    %v772 = vrot.slane %v771, 1
    %v773 = vadd.f32 %v771, %v772
    %v774 = vmul.f32 %v773, 0.0625
    %v775 = vadd.f32 %v774, 1e-05
    %v776 = vrsqrt.pop %v775
    %v777 = vmul.f32 %v761, %v776
    %v778 = vmul.f32 %v762, %v776
    %v779 = vlaneseq
    %v780 = vshrl.u32 %v779, 7
    %v781 = vsub.s32 1, %v780
    %v782 = vrot.slane %v642, %v781
    %v783 = vmul.f32 %v782, %v777
    %v784 = vmul.f32 %v782, %v778
    %v785 = vlaneseq
    %v786 = vshrl.u32 %v785, 7
    %v787 = vsub.s32 2, %v786
    %v788 = vrot.slane %v642, %v787
    %v789 = vadd.f32 %v783, %v788
    %v790 = vadd.f32 %v784, %v788
    %v791 = vmax.f32 %v789, 0.0
    %v792 = vmax.f32 %v790, 0.0
    %v793 = vadd.f32 %v791, %v639
    %v794 = vadd.f32 %v792, %v640
    %s795 = sshll.u32 %s388, 4
    %796 = dma.done %s194, %s795
    %v797 = vld [vmem:[#allocation3] sm:$0xff]
    %s798 = scalar_lea.vmem [#allocation14], 12
    %v799 = vld [vmem:[%s798] sm:$0x7]
    %v800 = vpack.c.bf16 %v384, %v381
    %v801 = vlaneseq
    %v802 = vshrl.u32 %v801, 7
    %v803 = vsub.s32 0, %v802
    %v804 = vrot.slane %v799, %v803
    %v806 = vsel %vm398, %v797, 0
    %808 = vmatprep.subr.bf16.mxu0 0
    %809 = vmatpush1.bf16.msra.mxu0 %v800
    %810 = vmatprep.subr.bf16.mxu0 0
    %811 = vmatpush1.bf16.msra.mxu0 0
    %812 = vmatprep.subr.bf16.mxu0 0
    %813 = vmatpush1.bf16.msra.mxu0 0
    %814 = vmatprep.subr.bf16.mxu0 0
    %815 = vmatpush1.bf16.msra.mxu0 0
    %816 = vmatprep.subr.bf16.mxu0 0
    %817 = vmatpush1.bf16.msra.mxu0 0
    %818 = vmatprep.subr.bf16.mxu0 0
    %819 = vmatpush1.bf16.msra.mxu0 0
    %820 = vmatprep.subr.bf16.mxu0 0
    %821 = vmatpush1.bf16.msra.mxu0 0
    %822 = vmatprep.subr.bf16.mxu0 0
    %823 = vmatpush1.bf16.msra.mxu0 0
    %824 = vmatprep.subr.bf16.mxu0 0
    %825 = vmatpush1.bf16.msra.mxu0 0
    %826 = vmatprep.subr.bf16.mxu0 0
    %827 = vmatpush1.bf16.msra.mxu0 0
    %828 = vmatprep.subr.bf16.mxu0 0
    %829 = vmatpush1.bf16.msra.mxu0 0
    %830 = vmatprep.subr.bf16.mxu0 0
    %831 = vmatpush1.bf16.msra.mxu0 0
    %832 = vmatprep.subr.bf16.mxu0 0
    %833 = vmatpush1.bf16.msra.mxu0 0
    %834 = vmatprep.subr.bf16.mxu0 0
    %835 = vmatpush1.bf16.msra.mxu0 0
    %836 = vmatprep.subr.bf16.mxu0 0
    %837 = vmatpush1.bf16.msra.mxu0 0
    %838 = vmatprep.subr.bf16.mxu0 0
    %839 = vmatpush1.bf16.msra.mxu0 0
    %840 = vmatprep.mubr.bf16.mxu0 0
    %841 = vmatmul.mubr.bf16.gmra.mrb[0].mxu0 %v806
    %v842 = vpop.f32.mrb[0].mxu0
    %v843 = vadd.f32 %v804, %v842
    %v844 = vpop.f32.mrb[0].mxu0
    %v845 = vpop.f32.mrb[0].mxu0
    %v846 = vadd.f32 %v804, %v845
    %v847 = vpop.f32.mrb[0].mxu0
    %848 = vdwg.mxu0
    %v849 = vsel %vm285, %v843, 0.0
    %v850 = vsel %vm285, %v846, 0.0
    %v851 = vadd.f32 %v849, %v850
    %v852 = vrot.slane %v851, 4
    %v853 = vadd.f32 %v851, %v852
    %v854 = vrot.slane %v853, 2
    %v855 = vadd.f32 %v853, %v854
    %v856 = vrot.slane %v855, 1
    %v857 = vadd.f32 %v855, %v856
    %v858 = vmul.f32 %v857, 0.0625
    %v859 = vsub.f32 %v843, %v858
    %v860 = vsub.f32 %v846, %v858
    %v861 = vmul.f32 %v859, %v859
    %v862 = vmul.f32 %v860, %v860
    %v863 = vsel %vm285, %v861, 0.0
    %v864 = vsel %vm285, %v862, 0.0
    %v865 = vadd.f32 %v863, %v864
    %v866 = vrot.slane %v865, 4
    %v867 = vadd.f32 %v865, %v866
    %v868 = vrot.slane %v867, 2
    %v869 = vadd.f32 %v867, %v868
    %v870 = vrot.slane %v869, 1
    %v871 = vadd.f32 %v869, %v870
    %v872 = vmul.f32 %v871, 0.0625
    %v873 = vadd.f32 %v872, 1e-05
    %v874 = vrsqrt.pop %v873
    %v875 = vmul.f32 %v859, %v874
    %v876 = vmul.f32 %v860, %v874
    %v877 = vlaneseq
    %v878 = vshrl.u32 %v877, 7
    %v879 = vsub.s32 1, %v878
    %v880 = vrot.slane %v799, %v879
    %v881 = vmul.f32 %v880, %v875
    %v882 = vmul.f32 %v880, %v876
    %v883 = vlaneseq
    %v884 = vshrl.u32 %v883, 7
    %v885 = vsub.s32 2, %v884
    %v886 = vrot.slane %v799, %v885
    %v887 = vadd.f32 %v881, %v886
    %v888 = vadd.f32 %v882, %v886
    %v889 = vmax.f32 %v887, 0.0
    %v890 = vmax.f32 %v888, 0.0
    %v891 = vadd.f32 %v889, %v262
    %v892 = vadd.f32 %v890, %v265
    %895 = vrot.lane.b32.xlu0 %v639, 32
    %v896 = vpop.permute.xlu0 %895
    %897 = vrot.lane.b32.xlu0 %v640, 32
    %v898 = vpop.permute.xlu0 %897
    %903 = vrot.lane.b32.xlu0 %v793, 64
    %v904 = vpop.permute.xlu0 %903
    %905 = vrot.lane.b32.xlu0 %v794, 64
    %v906 = vpop.permute.xlu0 %905
    %911 = vrot.lane.b32.xlu0 %v891, 96
    %v912 = vpop.permute.xlu0 %911
    %913 = vrot.lane.b32.xlu0 %v892, 96
    %v914 = vpop.permute.xlu0 %913
    %v917 = vsel %vm285, %v485, %v896
    %v918 = vsel %vm285, %v486, %v898
    %vm919 = vcmask 523264
    %v920 = vsel %vm919, %v917, %v904
    %v921 = vsel %vm919, %v918, %v906
    %vm922 = vcmask 785408
    %v923 = vsel %vm922, %v920, %v912
    %v924 = vsel %vm922, %v921, %v914
    %v925 = vld [vmem:[#allocation5] sm:$0xf]
    %v926 = vpack.c.bf16 %v924, %v923
    %v928 = vsel %vm398, %v925, 0
    %930 = vmatprep.subr.bf16.mxu0 0
    %931 = vmatpush1.bf16.msra.mxu0 %v926
    %932 = vmatprep.subr.bf16.mxu0 0
    %933 = vmatpush1.bf16.msra.mxu0 0
    %934 = vmatprep.subr.bf16.mxu0 0
    %935 = vmatpush1.bf16.msra.mxu0 0
    %936 = vmatprep.subr.bf16.mxu0 0
    %937 = vmatpush1.bf16.msra.mxu0 0
    %938 = vmatprep.subr.bf16.mxu0 0
    %939 = vmatpush1.bf16.msra.mxu0 0
    %940 = vmatprep.subr.bf16.mxu0 0
    %941 = vmatpush1.bf16.msra.mxu0 0
    %942 = vmatprep.subr.bf16.mxu0 0
    %943 = vmatpush1.bf16.msra.mxu0 0
    %944 = vmatprep.subr.bf16.mxu0 0
    %945 = vmatpush1.bf16.msra.mxu0 0
    %946 = vmatprep.subr.bf16.mxu0 0
    %947 = vmatpush1.bf16.msra.mxu0 0
    %948 = vmatprep.subr.bf16.mxu0 0
    %949 = vmatpush1.bf16.msra.mxu0 0
    %950 = vmatprep.subr.bf16.mxu0 0
    %951 = vmatpush1.bf16.msra.mxu0 0
    %952 = vmatprep.subr.bf16.mxu0 0
    %953 = vmatpush1.bf16.msra.mxu0 0
    %954 = vmatprep.subr.bf16.mxu0 0
    %955 = vmatpush1.bf16.msra.mxu0 0
    %956 = vmatprep.subr.bf16.mxu0 0
    %957 = vmatpush1.bf16.msra.mxu0 0
    %958 = vmatprep.subr.bf16.mxu0 0
    %959 = vmatpush1.bf16.msra.mxu0 0
    %960 = vmatprep.subr.bf16.mxu0 0
    %961 = vmatpush1.bf16.msra.mxu0 0
    %962 = vmatprep.mubr.bf16.mxu0 0
    %963 = vmatmul.mubr.bf16.gmra.mrb[0].mxu0 %v928
    %v964 = vpop.f32.mrb[0].mxu0
    %v965 = vadd.f32 0.0, %v964
    %v966 = vpop.f32.mrb[0].mxu0
    %v967 = vpop.f32.mrb[0].mxu0
    %v968 = vpop.f32.mrb[0].mxu0
    %969 = vdwg.mxu0
    %v970 = vld [vmem:[#allocation17] sm:$0xf]
    %v971 = vld [vmem:[#allocation17 + $0x4] sm:$0xf]
    %v972 = vld [vmem:[#allocation17 + $0x8] sm:$0xf]
    %v973 = vld [vmem:[#allocation17 + $0xc] sm:$0xf]
    %v974 = vld [vmem:[#allocation17 + $0x10] sm:$0xf]
    %v975 = vld [vmem:[#allocation17 + $0x14] sm:$0xf]
    %v976 = vld [vmem:[#allocation17 + $0x18] sm:$0xf]
    %v977 = vld [vmem:[#allocation17 + $0x1c] sm:$0xf]
    %v978 = vld [vmem:[#allocation17 + $0x20] sm:$0xf]
    %v979 = vld [vmem:[#allocation17 + $0x24] sm:$0xf]
    %v980 = vld [vmem:[#allocation17 + $0x28] sm:$0xf]
    %v981 = vld [vmem:[#allocation17 + $0x2c] sm:$0xf]
    %v982 = vld [vmem:[#allocation17 + $0x30] sm:$0xf]
    %v983 = vld [vmem:[#allocation17 + $0x34] sm:$0xf]
    %v984 = vld [vmem:[#allocation17 + $0x38] sm:$0xf]
    %v985 = vld [vmem:[#allocation17 + $0x3c] sm:$0xf]
    %v986 = vpack.c.bf16 %v965, %v965
    %v987 = vld [vmem:[#allocation16 + $0x1] sm:$0x1]
    %v988 = vlaneseq
    %v989 = vshrl.u32 %v988, 7
    %v990 = vsub.s32 0, %v989
    %v991 = vrot.slane %v987, %v990
    %v1008 = vunpack.c.l.b16 %v970
    %v1009 = vunpack.c.l.b16 %v971
    %v1010 = vunpack.c.l.b16 %v972
    %v1011 = vunpack.c.l.b16 %v973
    %v1012 = vunpack.c.l.b16 %v974
    %v1013 = vunpack.c.l.b16 %v975
    %v1014 = vunpack.c.l.b16 %v976
    %v1015 = vunpack.c.l.b16 %v977
    %v1016 = vunpack.c.l.b16 %v978
    %v1017 = vunpack.c.l.b16 %v979
    %v1018 = vunpack.c.l.b16 %v980
    %v1019 = vunpack.c.l.b16 %v981
    %v1020 = vunpack.c.l.b16 %v982
    %v1021 = vunpack.c.l.b16 %v983
    %v1022 = vunpack.c.l.b16 %v984
    %v1023 = vunpack.c.l.b16 %v985
    %v1024 = vpack.c.b16 %v1009, %v1008
    %v1025 = vpack.c.b16 %v1011, %v1010
    %v1026 = vpack.c.b16 %v1013, %v1012
    %v1027 = vpack.c.b16 %v1015, %v1014
    %v1028 = vpack.c.b16 %v1017, %v1016
    %v1029 = vpack.c.b16 %v1019, %v1018
    %v1030 = vpack.c.b16 %v1021, %v1020
    %v1031 = vpack.c.b16 %v1023, %v1022
    %1040 = vmatprep.subr.bf16.mxu0 0
    %1041 = vmatpush1.bf16.msra.mxu0 %v1024
    %1042 = vmatprep.subr.bf16.mxu0 0
    %1043 = vmatpush1.bf16.msra.mxu0 %v1025
    %1044 = vmatprep.subr.bf16.mxu0 0
    %1045 = vmatpush1.bf16.msra.mxu0 %v1026
    %1046 = vmatprep.subr.bf16.mxu0 0
    %1047 = vmatpush1.bf16.msra.mxu0 %v1027
    %1048 = vmatprep.subr.bf16.mxu0 0
    %1049 = vmatpush1.bf16.msra.mxu0 %v1028
    %1050 = vmatprep.subr.bf16.mxu0 0
    %1051 = vmatpush1.bf16.msra.mxu0 %v1029
    %1052 = vmatprep.subr.bf16.mxu0 0
    %1053 = vmatpush1.bf16.msra.mxu0 %v1030
    %1054 = vmatprep.subr.bf16.mxu0 0
    %1055 = vmatpush1.bf16.msra.mxu0 %v1031
    %1056 = vmatprep.subr.bf16.mxu0 0
    %1057 = vmatpush1.bf16.msra.mxu0 0
    %1058 = vmatprep.subr.bf16.mxu0 0
    %1059 = vmatpush1.bf16.msra.mxu0 0
    %1060 = vmatprep.subr.bf16.mxu0 0
    %1061 = vmatpush1.bf16.msra.mxu0 0
    %1062 = vmatprep.subr.bf16.mxu0 0
    %1063 = vmatpush1.bf16.msra.mxu0 0
    %1064 = vmatprep.subr.bf16.mxu0 0
    %1065 = vmatpush1.bf16.msra.mxu0 0
    %1066 = vmatprep.subr.bf16.mxu0 0
    %1067 = vmatpush1.bf16.msra.mxu0 0
    %1068 = vmatprep.subr.bf16.mxu0 0
    %1069 = vmatpush1.bf16.msra.mxu0 0
    %1070 = vmatprep.subr.bf16.mxu0 0
    %1071 = vmatpush1.bf16.msra.mxu0 0
    %1072 = vmatprep.mubr.bf16.mxu0 0
    %1073 = vmatmul.mubr.bf16.gmra.mrb[0].mxu0 %v986
    %v1074 = vpop.f32.mrb[0].mxu0
    %v1075 = vadd.f32 %v991, %v1074
    %v1076 = vpop.f32.mrb[0].mxu0
    %v1077 = vpop.f32.mrb[0].mxu0
    %v1078 = vpop.f32.mrb[0].mxu0
    %1079 = vdwg.mxu0
    %v1080 = vmax.f32 %v1075, 0.0
    %v1081 = vld [vmem:[#allocation19] sm:$0xf]
    %v1082 = vld [vmem:[#allocation19 + $0x4] sm:$0xf]
    %v1083 = vld [vmem:[#allocation19 + $0x8] sm:$0xf]
    %v1084 = vld [vmem:[#allocation19 + $0xc] sm:$0xf]
    %v1085 = vpack.c.bf16 %v1080, %v1080
    %v1086 = vld [vmem:[#allocation16 + $0x2] sm:$0x1]
    %v1087 = vlaneseq
    %v1088 = vshrl.u32 %v1087, 7
    %v1089 = vsub.s32 0, %v1088
    %v1090 = vrot.slane %v1086, %v1089
    %v1095 = vunpack.c.l.b16 %v1081
    %v1096 = vunpack.c.l.b16 %v1082
    %v1097 = vunpack.c.l.b16 %v1083
    %v1098 = vunpack.c.l.b16 %v1084
    %v1099 = vpack.c.b16 %v1096, %v1095
    %v1100 = vpack.c.b16 %v1098, %v1097
    %v1104 = vsel %vm285, %v1085, 0
    %1106 = vmatprep.subr.bf16.mxu0 0
    %1107 = vmatpush1.bf16.msra.mxu0 %v1099
    %1108 = vmatprep.subr.bf16.mxu0 0
    %1109 = vmatpush1.bf16.msra.mxu0 %v1100
    %1110 = vmatprep.subr.bf16.mxu0 0
    %1111 = vmatpush1.bf16.msra.mxu0 0
    %1112 = vmatprep.subr.bf16.mxu0 0
    %1113 = vmatpush1.bf16.msra.mxu0 0
    %1114 = vmatprep.subr.bf16.mxu0 0
    %1115 = vmatpush1.bf16.msra.mxu0 0
    %1116 = vmatprep.subr.bf16.mxu0 0
    %1117 = vmatpush1.bf16.msra.mxu0 0
    %1118 = vmatprep.subr.bf16.mxu0 0
    %1119 = vmatpush1.bf16.msra.mxu0 0
    %1120 = vmatprep.subr.bf16.mxu0 0
    %1121 = vmatpush1.bf16.msra.mxu0 0
    %1122 = vmatprep.subr.bf16.mxu0 0
    %1123 = vmatpush1.bf16.msra.mxu0 0
    %1124 = vmatprep.subr.bf16.mxu0 0
    %1125 = vmatpush1.bf16.msra.mxu0 0
    %1126 = vmatprep.subr.bf16.mxu0 0
    %1127 = vmatpush1.bf16.msra.mxu0 0
    %1128 = vmatprep.subr.bf16.mxu0 0
    %1129 = vmatpush1.bf16.msra.mxu0 0
    %1130 = vmatprep.subr.bf16.mxu0 0
    %1131 = vmatpush1.bf16.msra.mxu0 0
    %1132 = vmatprep.subr.bf16.mxu0 0
    %1133 = vmatpush1.bf16.msra.mxu0 0
    %1134 = vmatprep.subr.bf16.mxu0 0
    %1135 = vmatpush1.bf16.msra.mxu0 0
    %1136 = vmatprep.subr.bf16.mxu0 0
    %1137 = vmatpush1.bf16.msra.mxu0 0
    %1138 = vmatprep.mubr.bf16.mxu0 0
    %1139 = vmatmul.mubr.bf16.gmra.mrb[0].mxu0 %v1104
    %v1140 = vpop.f32.mrb[0].mxu0
    %v1141 = vadd.f32 %v1090, %v1140
    %v1142 = vpop.f32.mrb[0].mxu0
    %v1143 = vpop.f32.mrb[0].mxu0
    %v1144 = vpop.f32.mrb[0].mxu0
    %1145 = vdwg.mxu0
    %v1146 = vmax.f32 %v1141, 0.0
    %v1147 = vld [vmem:[#allocation20] sm:$0xf]
    %v1148 = vld [vmem:[#allocation20 + $0x4] sm:$0xf]
    %v1149 = vld [vmem:[#allocation20 + $0x8] sm:$0xf]
    %v1150 = vld [vmem:[#allocation20 + $0xc] sm:$0xf]
    %v1151 = vpack.c.bf16 %v1146, %v1146
    %v1152 = vld [vmem:[#allocation22] sm:$0x1]
    %v1154 = vlaneseq
    %v1155 = vshrl.u32 %v1154, 7
    %v1156 = vsub.s32 0, %v1155
    %v1157 = vrot.slane %v1152, %v1156
    %v1163 = vunpack.c.l.b16 %v1147
    %v1164 = vunpack.c.l.b16 %v1148
    %v1165 = vunpack.c.l.b16 %v1149
    %v1166 = vunpack.c.l.b16 %v1150
    %v1167 = vpack.c.b16 %v1164, %v1163
    %v1168 = vpack.c.b16 %v1166, %v1165
    %v1172 = vsel %vm285, %v1151, 0
    %1174 = vmatprep.subr.bf16.mxu0 0
    %1175 = vmatpush1.bf16.msra.mxu0 %v1167
    %1176 = vmatprep.subr.bf16.mxu0 0
    %1177 = vmatpush1.bf16.msra.mxu0 %v1168
    %1178 = vmatprep.subr.bf16.mxu0 0
    %1179 = vmatpush1.bf16.msra.mxu0 0
    %1180 = vmatprep.subr.bf16.mxu0 0
    %1181 = vmatpush1.bf16.msra.mxu0 0
    %1182 = vmatprep.subr.bf16.mxu0 0
    %1183 = vmatpush1.bf16.msra.mxu0 0
    %1184 = vmatprep.subr.bf16.mxu0 0
    %1185 = vmatpush1.bf16.msra.mxu0 0
    %1186 = vmatprep.subr.bf16.mxu0 0
    %1187 = vmatpush1.bf16.msra.mxu0 0
    %1188 = vmatprep.subr.bf16.mxu0 0
    %1189 = vmatpush1.bf16.msra.mxu0 0
    %1190 = vmatprep.subr.bf16.mxu0 0
    %1191 = vmatpush1.bf16.msra.mxu0 0
    %1192 = vmatprep.subr.bf16.mxu0 0
    %1193 = vmatpush1.bf16.msra.mxu0 0
    %1194 = vmatprep.subr.bf16.mxu0 0
    %1195 = vmatpush1.bf16.msra.mxu0 0
    %1196 = vmatprep.subr.bf16.mxu0 0
    %1197 = vmatpush1.bf16.msra.mxu0 0
    %1198 = vmatprep.subr.bf16.mxu0 0
    %1199 = vmatpush1.bf16.msra.mxu0 0
    %1200 = vmatprep.subr.bf16.mxu0 0
    %1201 = vmatpush1.bf16.msra.mxu0 0
    %1202 = vmatprep.subr.bf16.mxu0 0
    %1203 = vmatpush1.bf16.msra.mxu0 0
    %1204 = vmatprep.subr.bf16.mxu0 0
    %1205 = vmatpush1.bf16.msra.mxu0 0
    %1206 = vmatprep.mubr.bf16.mxu0 0
    %1207 = vmatmul.mubr.bf16.gmra.mrb[0].mxu0 %v1172
    %v1208 = vpop.f32.mrb[0].mxu0
    %v1209 = vadd.f32 %v1157, %v1208
    %v1210 = vpop.f32.mrb[0].mxu0
    %v1211 = vpop.f32.mrb[0].mxu0
    %v1212 = vpop.f32.mrb[0].mxu0
    %1213 = vdwg.mxu0
    %vm1214 = vcmask 31744
    %1215 = vst.msk [vmem:[#allocation23] sm:$0xff] %vm1214, %v1209
    // Predicated region
    $region98: #{tpu_custom_call.1} parent=1 // pred_check
      _
    $region99: #{tpu_custom_call.1} parent=1 // pred_check_branch
      %1217 = sbr.rel (0) target = $region101
    $region100: #{tpu_custom_call.1} parent=1 // pred_region
      %s1219 = ssub.s32 128, 128
      %1220 = vsyncadd [#allocation7], %s1219
      %s1222 = sshll.u32 [#allocation23], 4
      %s1223 = int_to_ptr.vmem [resolvable:$true] %s1222
      %1225 = dma.vmem_to_hbm [thread:$0]  %s1223, 128, %s13, [#allocation7]
    $region101: #{tpu_custom_call.1} parent=1 // pred_fallthru
      _
    // Predicated region
    $region102: #{tpu_custom_call.1} parent=1 // pred_check
      _
    $region103: #{tpu_custom_call.1} parent=1 // pred_check_branch
      %1227 = sbr.rel (0) target = $region105
    $region104: #{tpu_custom_call.1} parent=1 // pred_region
      %1228 = dma.done [#allocation7], 128
    $region105: #{tpu_custom_call.1} parent=1 // pred_fallthru
      _
    %1229 = vsyncpa [#allocation6], 1
    %1230 = vsyncpa [#allocation9], 1
    %1231 = vsyncpa [#allocation12], 1
    %1232 = vsyncpa [#allocation15], 1
    %1233 = vsyncpa [#allocation18], 1
    %1234 = vsyncpa [#allocation21], 1
    %1235 = vsyncpa [#allocation7], 1
  %1236 = vsyncmov [#allocation4]
  %s1237 = vpop.sfrf %1236
  %p1238 = scmp.eq.s32.totalorder %s1237, 0
  %p1239 = pneg %p1238
  %1241 = shalt.err (%p1239)
  %s1242 = scalar_lea.sflag [#allocation4], 1
  %1243 = vsyncmov %s1242
  %s1244 = vpop.sfrf %1243
  %p1245 = scmp.eq.s32.totalorder %s1244, 0
  %p1246 = pneg %p1245
  %1248 = shalt.err (%p1246)

</llo_original>
